<compile_context>
chip_gen: v7x
topology: tpu7x:2x2x1
jax: 0.10.0
libtpu: 0.0.40
codegen_flags: <defaults>
</compile_context>

<pallas_src>
import functools
import math

import numpy as np
import jax
import jax.numpy as jnp
from jax.experimental import pallas as pl
from jax.experimental.pallas import tpu as pltpu

LANES = 128


# --------------------------------------------------------------------------- #
# Tiling helpers                                                               #
# --------------------------------------------------------------------------- #
def _lcm(a, b):
    return a * b // math.gcd(a, b)


def _pick_rows(total, align, max_rows):
    """Largest divisor of `total` that is a multiple of `align`, <= max_rows,
    preferring a grid length >= 2 (megacore / dual-TC sharding on v7x)."""
    best_single = None
    for d in range(min(total, max_rows), 0, -1):
        if total % d or d % align:
            continue
        if total // d >= 2:
            return d
        if best_single is None:
            best_single = d
    if best_single is not None:
        return best_single
    raise ValueError(f"no valid row tile for total={total}, align={align}")


def _vmem_limit_bytes():
    # v5e/v6e: 128 MiB VMEM per TensorCore; v7x: 64 MiB. Gate the scoped limit
    # (and through it the row-tile size) on the generation.
    cap = 64 * 1024 * 1024
    try:
        cap = int(getattr(pltpu.get_tpu_info(), "vmem_capacity_bytes", cap))
    except Exception:
        pass
    return int(min(cap * 3 // 4, 96 * 1024 * 1024))


def _max_rows(vmem_limit):
    # ~10 KiB of live VMEM per packed row (f32 temporaries + pipelined blocks).
    return max(64, min(4096, (vmem_limit // 2) // (10 * 1024)))


# --------------------------------------------------------------------------- #
# In-kernel building blocks                                                    #
# --------------------------------------------------------------------------- #
def _mlp_norm_residual(x, avg, w1, b1, w2, b2):
    """mlp(BiasFree_LayerNorm(x)) + x on a lane-packed (rows, P*C) slab.

    LN weight, channel split, g=8 shuffle and the passthrough half are folded
    into w1/w2 (see fold_mlp_params).  Stats are two independent bf16 MXU
    matmuls; var = E[x^2] - mean^2 clamped >= 0."""
    x16 = x.astype(jnp.bfloat16)
    sq16 = (x * x).astype(jnp.bfloat16)
    mean = jnp.dot(x16, avg, preferred_element_type=jnp.float32)
    ex2 = jnp.dot(sq16, avg, preferred_element_type=jnp.float32)
    var = jnp.maximum(ex2 - mean * mean, 0.0)
    ln16 = ((x - mean) * jax.lax.rsqrt(var + 1e-5)).astype(jnp.bfloat16)

    h = jnp.dot(ln16, w1, preferred_element_type=jnp.float32) + b1
    h = h * jax.nn.sigmoid(h)                                   # SiLU (EUP)

    cat = jnp.concatenate([ln16, h.astype(jnp.bfloat16)], axis=-1)
    out = jnp.dot(cat, w2, preferred_element_type=jnp.float32) + b2
    return out + x                                              # residual (f32)


def _w_shift(y, off, C, keep_first, keep_last):
    """Shift the packed slab by `off` pixels along W.

    Lane shift of |off|*C inside each 128-lane row plus a carry from the
    adjacent packed row, zeroed at scanline starts/ends via the per-row
    multiplicative masks (so the conv sees zero padding along W)."""
    T, L = y.shape
    oc = abs(off) * C
    if off > 0:
        carry = jnp.concatenate(
            [y[1:, :oc], jnp.zeros((1, oc), y.dtype)], axis=0) * keep_last
        return jnp.concatenate([y[:, oc:], carry], axis=1)
    carry = jnp.concatenate(
        [jnp.zeros((1, oc), y.dtype), y[:-1, L - oc:]], axis=0) * keep_first
    return jnp.concatenate([carry, y[:, :L - oc]], axis=1)


# --------------------------------------------------------------------------- #
# The fused SMLayer kernel                                                     #
# --------------------------------------------------------------------------- #
def sm_layer_kernel(prev_ref, cur_ref, nxt_ref, kfirst_ref, klast_ref, avg_ref,
                    w1a_ref, b1a_ref, w2a_ref, b2a_ref,
                    kt_ref, bc_ref,
                    w1b_ref, b1b_ref, w2b_ref, b2b_ref,
                    o_ref, *, tr, hb, nWp, C, K, R):
    p = K // 2
    i = pl.program_id(1)

    # ---- stage 1: y = mlp1(norm1(x)) + x on tile + K//2 halo scanlines ----
    xe = jnp.concatenate(
        [prev_ref[0], cur_ref[0], nxt_ref[0]], axis=0).astype(jnp.float32)
    y = _mlp_norm_residual(xe, avg_ref[...], w1a_ref[...], b1a_ref[...],
                           w2a_ref[...], b2a_ref[...])
    # Zero the halo rows that fall outside the image (H-direction zero pad).
    row = jax.lax.broadcasted_iota(jnp.int32, y.shape, 0)
    g = i * tr - hb + row
    y = jnp.where(jnp.logical_and(g >= 0, g < R), y, 0.0)

    # ---- stage 2: depthwise KxK conv (stride 1, pad K//2) ------------------
    kt = kt_ref[...]
    keep_first = kfirst_ref[...]
    keep_last = klast_ref[...]
    acc = jnp.zeros((tr, y.shape[1]), jnp.float32)
    for dw in range(K):                          # K W-shifts total (not K*K)
        off = dw - p
        sh = y if off == 0 else _w_shift(y, off, C, keep_first, keep_last)
        for dh in range(K):
            r0 = hb + (dh - p) * nWp
            acc = acc + sh[r0:r0 + tr, :] * kt[dh * K + dw: dh * K + dw + 1, :]
    z = acc + bc_ref[...]

    # ---- stage 3: out = mlp2(norm2(z)) + z ---------------------------------
    out = _mlp_norm_residual(z, avg_ref[...], w1b_ref[...], b1b_ref[...],
                             w2b_ref[...], b2b_ref[...])
    o_ref[0] = out.astype(o_ref.dtype)


def sm_layer_packed(x_packed, params, *, C, K, W):
    """x_packed: (B, R, 128) channels-last, 128-lane packed activations."""
    B, R, L = x_packed.shape
    assert L == LANES and LANES % C == 0
    assert (W * C) % LANES == 0, "W*C must be a multiple of 128 lanes"
    assert K % 2 == 1
    p = K // 2
    P = LANES // C
    nWp = (W * C) // LANES                    # packed rows per scanline
    assert p < P, "kernel_size too large for this lane packing"
    hb = 8 * ((nWp + 7) // 8)                 # sublane-aligned halo block
    align = _lcm(_lcm(8, nWp), hb)

    vmem_limit = _vmem_limit_bytes()
    max_rows = max(_max_rows(vmem_limit), align)
    tr = _pick_rows(R, align, max_rows)       # packed rows per grid step
    nH = R // tr
    nblk = tr // hb
    t_ext = tr + 2 * hb

    (avg, w1a, b1a, w2a, b2a, ktp, bcp, w1b, b1b, w2b, b2b) = params
    PH = w1a.shape[1]

    # Per-row multiplicative masks for the W-direction carry: zero at the
    # start / end of every scanline (small (t_ext, 1) f32, VMEM resident).
    e = np.arange(t_ext)
    keep_first = ((e - hb) % nWp != 0).astype(np.float32)[:, None]
    keep_last = ((e - hb) % nWp != nWp - 1).astype(np.float32)[:, None]

    kernel = functools.partial(sm_layer_kernel, tr=tr, hb=hb, nWp=nWp,
                               C=C, K=K, R=R)
    cmap = lambda b, i: (0, 0)
    return pl.pallas_call(
        kernel,
        out_shape=jax.ShapeDtypeStruct((B, R, LANES), x_packed.dtype),
        grid_spec=pltpu.PrefetchScalarGridSpec(
            num_scalar_prefetch=0,
            grid=(B, nH),
            in_specs=[
                pl.BlockSpec((1, hb, LANES),                       # halo above
                             lambda b, i: (b, jnp.maximum(i * nblk - 1, 0), 0)),
                pl.BlockSpec((1, tr, LANES), lambda b, i: (b, i, 0)),  # tile
                pl.BlockSpec((1, hb, LANES),                       # halo below
                             lambda b, i: (b, jnp.minimum((i + 1) * nblk,
                                                          R // hb - 1), 0)),
                pl.BlockSpec((t_ext, 1), cmap),      # keep_first (scanline start)
                pl.BlockSpec((t_ext, 1), cmap),      # keep_last  (scanline end)
                pl.BlockSpec((LANES, LANES), cmap),  # block-averaging matrix (bf16)
                pl.BlockSpec((LANES, PH), cmap),     # mlp1 fc1 (bf16, LN-w folded)
                pl.BlockSpec((1, PH), cmap),         # mlp1 fc1 bias
                pl.BlockSpec((LANES + PH, LANES), cmap),  # mlp1 fused fc2+shuffle
                pl.BlockSpec((1, LANES), cmap),      # mlp1 fc2 bias (shuffled)
                pl.BlockSpec((K * K, LANES), cmap),  # dwconv taps
                pl.BlockSpec((1, LANES), cmap),      # dwconv bias
                pl.BlockSpec((LANES, PH), cmap),     # mlp2 fc1
                pl.BlockSpec((1, PH), cmap),
                pl.BlockSpec((LANES + PH, LANES), cmap),
                pl.BlockSpec((1, LANES), cmap),
            ],
            out_specs=pl.BlockSpec((1, tr, LANES), lambda b, i: (b, i, 0)),
        ),
        compiler_params=pltpu.CompilerParams(
            dimension_semantics=("parallel", "parallel"),
            vmem_limit_bytes=vmem_limit),
    )(x_packed, x_packed, x_packed,
      jnp.asarray(keep_first), jnp.asarray(keep_last),
      avg, w1a, b1a, w2a, b2a, ktp, bcp, w1b, b1b, w2b, b2b)


def sm_layer(x_nchw, params, *, K):
    B, C, H, W = x_nchw.shape
    x = jnp.transpose(x_nchw, (0, 2, 3, 1))          # NHWC (module boundary only)
    R = (H * W * C) // LANES
    y = sm_layer_packed(x.reshape(B, R, LANES), params, C=C, K=K, W=W)
    return jnp.transpose(y.reshape(B, H, W, C), (0, 3, 1, 2))


# --------------------------------------------------------------------------- #
# Parameter folding (LN weight + split + shuffle + lane packing -> matmuls)    #
# --------------------------------------------------------------------------- #
def _shuffle_perm(C, g=8):
    # rearrange 'b (g d) h w -> b (d g) h w': out[d*g + gi] = y[gi*(C//g) + d]
    d = C // g
    perm = np.zeros(C, dtype=np.int64)
    for gi in range(g):
        for di in range(d):
            perm[di * g + gi] = gi * d + di
    return perm


def fold_mlp_params(ln_w, w1, b1, w2, b2, C, P, g=8):
    half = C // 2
    hidden = w1.shape[0]
    perm = _shuffle_perm(C, g)
    PM = np.zeros((C, C), np.float32)                 # out = y @ PM (row vectors)
    PM[perm, np.arange(C)] = 1.0
    PM_top, PM_bot = PM[:half, :], PM[half:, :]
    lnw = np.asarray(ln_w, np.float32)

    w1f = np.zeros((C, hidden), np.float32)           # zero rows: 2nd half unused
    w1f[:half, :] = np.asarray(w1, np.float32).T
    w1f = lnw[:, None] * w1f                          # fold LN weight
    w2p = np.asarray(w2, np.float32).T @ PM_top       # fc2 + shuffle
    b2p = np.asarray(b2, np.float32) @ PM_top
    sel = np.zeros((C, C), np.float32)                # passthrough half -> shuffle
    sel[half:, :] = PM_bot
    sel = lnw[:, None] * sel                          # fold LN weight

    def blkdiag(m):                                   # P pixels packed per row
        return np.kron(np.eye(P, dtype=np.float32), m)

    w1P = blkdiag(w1f)                                # (P*C, P*hidden)
    w2P = np.vstack([blkdiag(sel), blkdiag(w2p)])     # (P*C + P*hidden, P*C)
    b1P = np.tile(np.asarray(b1, np.float32), P)[None, :]
    b2P = np.tile(b2p, P)[None, :]
    return (jnp.asarray(w1P, jnp.bfloat16), jnp.asarray(b1P),
            jnp.asarray(w2P, jnp.bfloat16), jnp.asarray(b2P))


def fold_conv_params(sp_w, sp_b, P):
    # sp_w: (K, K, C), sp_b: (C,) -> per-tap weights tiled P pixels per 128 lanes.
    K, _, C = sp_w.shape
    kt = np.tile(np.asarray(sp_w, np.float32).reshape(K * K, 1, C),
                 (1, P, 1)).reshape(K * K, P * C)
    bt = np.tile(np.asarray(sp_b, np.float32), P)[None, :]
    return jnp.asarray(kt), jnp.asarray(bt)


def fold_params(raw, C, g=8):
    assert C % 2 == 0 and C % g == 0 and LANES % C == 0
    P = LANES // C
    # Block-averaging matrix: exact in bf16 for power-of-two C (1/C = 2^-k).
    avg = np.kron(np.eye(P, dtype=np.float32),
                  np.full((C, C), 1.0 / C, np.float32))
    m1 = fold_mlp_params(raw['ln1_w'], raw['w1_1'], raw['b1_1'],
                         raw['w2_1'], raw['b2_1'], C, P, g)
    m2 = fold_mlp_params(raw['ln2_w'], raw['w1_2'], raw['b1_2'],
                         raw['w2_2'], raw['b2_2'], C, P, g)
    kt, bt = fold_conv_params(raw['sp_w'], raw['sp_b'], P)
    return (jnp.asarray(avg, jnp.bfloat16), *m1, kt, bt, *m2)


# --------------------------------------------------------------------------- #
# Pure-JAX reference (straight transcription of the PyTorch module)            #
# --------------------------------------------------------------------------- #
def ref_sm_layer(x_nhwc, raw, g=8):
    hp = jax.lax.Precision.HIGHEST

    def ln(v, w):
        mu = jnp.mean(v, -1, keepdims=True)
        var = jnp.mean((v - mu) ** 2, -1, keepdims=True)
        return (v - mu) / jnp.sqrt(var + 1e-5) * w

    def mlp(v, w1, b1, w2, b2):
        C = v.shape[-1]
        half = C // 2
        v1, v2 = v[..., :half], v[..., half:]
        h = jnp.einsum('bhwc,oc->bhwo', v1, w1, precision=hp) + b1
        h = h * jax.nn.sigmoid(h)
        a = jnp.einsum('bhwc,oc->bhwo', h, w2, precision=hp) + b2
        y = jnp.concatenate([a, v2], axis=-1)
        Bd, Hd, Wd = y.shape[:3]
        y = y.reshape(Bd, Hd, Wd, g, C // g)
        return jnp.transpose(y, (0, 1, 2, 4, 3)).reshape(Bd, Hd, Wd, C)

    def dconv(v, kern, bias):
        Kk = kern.shape[0]
        p = Kk // 2
        Bd, Hd, Wd, Cd = v.shape
        vp = jnp.pad(v, ((0, 0), (p, p), (p, p), (0, 0)))
        o = jnp.zeros_like(v)
        for dh in range(Kk):
            for dw in range(Kk):
                o = o + vp[:, dh:dh + Hd, dw:dw + Wd, :] * kern[dh, dw]
        return o + bias

    y = mlp(ln(x_nhwc, raw['ln1_w']), raw['w1_1'], raw['b1_1'],
            raw['w2_1'], raw['b2_1']) + x_nhwc
    y = dconv(y, raw['sp_w'], raw['sp_b'])
    y = mlp(ln(y, raw['ln2_w']), raw['w1_2'], raw['b1_2'],
            raw['w2_2'], raw['b2_2']) + y
    return y


if __name__ == "__main__":
    key = jax.random.PRNGKey(0)
    B, C, H, W = 2, 32, 16, 16          # dim divisible by 8 (g=8 shuffle), 128 % C == 0
    K = 3                               # kernel_size
    g = 8
    half = C // 2
    hidden = int(C // 2 * 2)            # mlp_ratio = 2 -> hidden == dim

    keys = jax.random.split(key, 14)
    x = jax.random.normal(keys[0], (B, C, H, W), jnp.float32)

    def nrm(k, shape, s=0.1):
        return s * jax.random.normal(k, shape, jnp.float32)

    # Synthetic parameters (LN weights perturbed from 1 to exercise the fold;
    # depthwise conv weight stored as (K, K, C) == PyTorch (C,1,K,K) transposed).
    raw = dict(
        ln1_w=1.0 + nrm(keys[11], (C,)),
        w1_1=nrm(keys[1], (hidden, half)), b1_1=nrm(keys[2], (hidden,)),
        w2_1=nrm(keys[3], (half, hidden)), b2_1=nrm(keys[4], (half,)),
        ln2_w=1.0 + nrm(keys[12], (C,)),
        w1_2=nrm(keys[5], (hidden, half)), b1_2=nrm(keys[6], (hidden,)),
        w2_2=nrm(keys[7], (half, hidden)), b2_2=nrm(keys[8], (half,)),
        sp_w=nrm(keys[9], (K, K, C)), sp_b=nrm(keys[10], (C,)),
    )

    params = fold_params(raw, C, g)
    out = sm_layer(x, params, K=K)
    out = jax.block_until_ready(out)

    ref = ref_sm_layer(jnp.transpose(x, (0, 2, 3, 1)), raw, g)
    ref = jnp.transpose(ref, (0, 3, 1, 2))
    np.testing.assert_allclose(np.asarray(out), np.asarray(ref),
                               rtol=2e-2, atol=2e-2)

    print("KERNEL_OK")
</pallas_src>

<mosaic_0001>
module attributes {stable_mosaic.version = 11 : i64} {
  func.func @sm_layer_kernel(%arg0: i32, %arg1: i32, %arg2: memref<1x8x128xf32, #tpu.memory_space<vmem>>, %arg3: memref<1x32x128xf32, #tpu.memory_space<vmem>>, %arg4: memref<1x8x128xf32, #tpu.memory_space<vmem>>, %arg5: memref<48x1xf32, #tpu.memory_space<vmem>>, %arg6: memref<48x1xf32, #tpu.memory_space<vmem>>, %arg7: memref<128x128xbf16, #tpu.memory_space<vmem>>, %arg8: memref<128x128xbf16, #tpu.memory_space<vmem>>, %arg9: memref<1x128xf32, #tpu.memory_space<vmem>>, %arg10: memref<256x128xbf16, #tpu.memory_space<vmem>>, %arg11: memref<1x128xf32, #tpu.memory_space<vmem>>, %arg12: memref<9x128xf32, #tpu.memory_space<vmem>>, %arg13: memref<1x128xf32, #tpu.memory_space<vmem>>, %arg14: memref<128x128xbf16, #tpu.memory_space<vmem>>, %arg15: memref<1x128xf32, #tpu.memory_space<vmem>>, %arg16: memref<256x128xbf16, #tpu.memory_space<vmem>>, %arg17: memref<1x128xf32, #tpu.memory_space<vmem>>, %arg18: memref<1x32x128xf32, #tpu.memory_space<vmem>>) attributes {dimension_semantics = [#tpu.dimension_semantics<parallel>, #tpu.dimension_semantics<parallel>], iteration_bounds = array<i64: 2, 2>, scalar_prefetch = 0 : i64, scratch_operands = 0 : i64, tpu.core_type = #tpu.core_type<tc>, window_params = [{transform_indices = @transform_0, window_bounds = array<i64: 1, 8, 128>}, {transform_indices = @transform_1, window_bounds = array<i64: 1, 32, 128>}, {transform_indices = @transform_2, window_bounds = array<i64: 1, 8, 128>}, {pipeline_mode = #tpu.pipeline_mode<synchronous>, transform_indices = @transform_3, window_bounds = array<i64: 48, 1>}, {pipeline_mode = #tpu.pipeline_mode<synchronous>, transform_indices = @transform_4, window_bounds = array<i64: 48, 1>}, {pipeline_mode = #tpu.pipeline_mode<synchronous>, transform_indices = @transform_5, window_bounds = array<i64: 128, 128>}, {pipeline_mode = #tpu.pipeline_mode<synchronous>, transform_indices = @transform_6, window_bounds = array<i64: 128, 128>}, {pipeline_mode = #tpu.pipeline_mode<synchronous>, transform_indices = @transform_7, window_bounds = array<i64: 1, 128>}, {pipeline_mode = #tpu.pipeline_mode<synchronous>, transform_indices = @transform_8, window_bounds = array<i64: 256, 128>}, {pipeline_mode = #tpu.pipeline_mode<synchronous>, transform_indices = @transform_9, window_bounds = array<i64: 1, 128>}, {pipeline_mode = #tpu.pipeline_mode<synchronous>, transform_indices = @transform_10, window_bounds = array<i64: 9, 128>}, {pipeline_mode = #tpu.pipeline_mode<synchronous>, transform_indices = @transform_11, window_bounds = array<i64: 1, 128>}, {pipeline_mode = #tpu.pipeline_mode<synchronous>, transform_indices = @transform_12, window_bounds = array<i64: 128, 128>}, {pipeline_mode = #tpu.pipeline_mode<synchronous>, transform_indices = @transform_13, window_bounds = array<i64: 1, 128>}, {pipeline_mode = #tpu.pipeline_mode<synchronous>, transform_indices = @transform_14, window_bounds = array<i64: 256, 128>}, {pipeline_mode = #tpu.pipeline_mode<synchronous>, transform_indices = @transform_15, window_bounds = array<i64: 1, 128>}, {transform_indices = @transform_16, window_bounds = array<i64: 1, 32, 128>}]} {
    %c0 = arith.constant 0 : index
    %c0_0 = arith.constant 0 : index
    %c0_1 = arith.constant 0 : index
    %0 = vector.load %arg2[%c0, %c0_0, %c0_1] : memref<1x8x128xf32, #tpu.memory_space<vmem>>, vector<1x8x128xf32>
    %1 = vector.shape_cast %0 : vector<1x8x128xf32> to vector<8x128xf32>
    %c0_2 = arith.constant 0 : index
    %c0_3 = arith.constant 0 : index
    %c0_4 = arith.constant 0 : index
    %2 = vector.load %arg3[%c0_2, %c0_3, %c0_4] : memref<1x32x128xf32, #tpu.memory_space<vmem>>, vector<1x32x128xf32>
    %3 = vector.shape_cast %2 : vector<1x32x128xf32> to vector<32x128xf32>
    %c0_5 = arith.constant 0 : index
    %c0_6 = arith.constant 0 : index
    %c0_7 = arith.constant 0 : index
    %4 = vector.load %arg4[%c0_5, %c0_6, %c0_7] : memref<1x8x128xf32, #tpu.memory_space<vmem>>, vector<1x8x128xf32>
    %5 = vector.shape_cast %4 : vector<1x8x128xf32> to vector<8x128xf32>
    %6 = tpu.concatenate %1, %3, %5 in 0 : vector<8x128xf32>, vector<32x128xf32>, vector<8x128xf32> -> vector<48x128xf32>
    %c0_8 = arith.constant 0 : index
    %c0_9 = arith.constant 0 : index
    %7 = vector.load %arg7[%c0_8, %c0_9] : memref<128x128xbf16, #tpu.memory_space<vmem>>, vector<128x128xbf16>
    %c0_10 = arith.constant 0 : index
    %c0_11 = arith.constant 0 : index
    %8 = vector.load %arg8[%c0_10, %c0_11] : memref<128x128xbf16, #tpu.memory_space<vmem>>, vector<128x128xbf16>
    %c0_12 = arith.constant 0 : index
    %c0_13 = arith.constant 0 : index
    %9 = vector.load %arg9[%c0_12, %c0_13] : memref<1x128xf32, #tpu.memory_space<vmem>>, vector<1x128xf32>
    %c0_14 = arith.constant 0 : index
    %c0_15 = arith.constant 0 : index
    %10 = vector.load %arg10[%c0_14, %c0_15] : memref<256x128xbf16, #tpu.memory_space<vmem>>, vector<256x128xbf16>
    %c0_16 = arith.constant 0 : index
    %c0_17 = arith.constant 0 : index
    %11 = vector.load %arg11[%c0_16, %c0_17] : memref<1x128xf32, #tpu.memory_space<vmem>>, vector<1x128xf32>
    %12 = arith.truncf %6 : vector<48x128xf32> to vector<48x128xbf16>
    %13 = arith.mulf %6, %6 : vector<48x128xf32>
    %14 = arith.truncf %13 : vector<48x128xf32> to vector<48x128xbf16>
    %cst = arith.constant dense<0.000000e+00> : vector<48x128xf32>
    %15 = tpu.matmul %12, %7, %cst {dimension_numbers = #tpu.dot_dimension_numbers<[1], [0], [0], [1], [0, 0, 1, 1], [], []>} : vector<48x128xbf16>, vector<128x128xbf16>, vector<48x128xf32> -> vector<48x128xf32>
    %cst_18 = arith.constant dense<0.000000e+00> : vector<48x128xf32>
    %16 = tpu.matmul %14, %7, %cst_18 {dimension_numbers = #tpu.dot_dimension_numbers<[1], [0], [0], [1], [0, 0, 1, 1], [], []>} : vector<48x128xbf16>, vector<128x128xbf16>, vector<48x128xf32> -> vector<48x128xf32>
    %17 = arith.mulf %15, %15 : vector<48x128xf32>
    %18 = arith.subf %16, %17 : vector<48x128xf32>
    %cst_19 = arith.constant 0.000000e+00 : f32
    %19 = vector.broadcast %cst_19 : f32 to vector<48x128xf32>
    %20 = arith.maximumf %18, %19 : vector<48x128xf32>
    %21 = arith.subf %6, %15 : vector<48x128xf32>
    %cst_20 = arith.constant 9.99999974E-6 : f32
    %22 = vector.broadcast %cst_20 : f32 to vector<48x128xf32>
    %23 = arith.addf %20, %22 : vector<48x128xf32>
    %24 = math.rsqrt %23 : vector<48x128xf32>
    %25 = arith.mulf %21, %24 : vector<48x128xf32>
    %26 = arith.truncf %25 : vector<48x128xf32> to vector<48x128xbf16>
    %cst_21 = arith.constant dense<0.000000e+00> : vector<48x128xf32>
    %27 = tpu.matmul %26, %8, %cst_21 {dimension_numbers = #tpu.dot_dimension_numbers<[1], [0], [0], [1], [0, 0, 1, 1], [], []>} : vector<48x128xbf16>, vector<128x128xbf16>, vector<48x128xf32> -> vector<48x128xf32>
    %28 = vector.broadcast %9 : vector<1x128xf32> to vector<48x128xf32>
    %29 = arith.addf %27, %28 : vector<48x128xf32>
    %30 = arith.negf %29 : vector<48x128xf32>
    %31 = math.exp %30 : vector<48x128xf32>
    %cst_22 = arith.constant 1.000000e+00 : f32
    %32 = vector.broadcast %cst_22 : f32 to vector<48x128xf32>
    %33 = arith.addf %32, %31 : vector<48x128xf32>
    %34 = arith.divf %32, %33 : vector<48x128xf32>
    %35 = arith.mulf %29, %34 : vector<48x128xf32>
    %36 = arith.truncf %35 : vector<48x128xf32> to vector<48x128xbf16>
    %37 = tpu.concatenate %26, %36 in 1 : vector<48x128xbf16>, vector<48x128xbf16> -> vector<48x256xbf16>
    %cst_23 = arith.constant dense<0.000000e+00> : vector<48x128xf32>
    %38 = tpu.matmul %37, %10, %cst_23 {dimension_numbers = #tpu.dot_dimension_numbers<[1], [0], [0], [1], [0, 0, 1, 1], [], []>} : vector<48x256xbf16>, vector<256x128xbf16>, vector<48x128xf32> -> vector<48x128xf32>
    %39 = vector.broadcast %11 : vector<1x128xf32> to vector<48x128xf32>
    %40 = arith.addf %38, %39 : vector<48x128xf32>
    %41 = arith.addf %40, %6 : vector<48x128xf32>
    %42 = tpu.iota {dimensions = array<i32: 0>} : vector<48x128xi32>
    %c32_i32 = arith.constant 32 : i32
    %43 = arith.muli %arg1, %c32_i32 : i32
    %c8_i32 = arith.constant 8 : i32
    %44 = arith.subi %43, %c8_i32 : i32
    %45 = vector.broadcast %44 : i32 to vector<48x128xi32>
    %46 = arith.addi %45, %42 : vector<48x128xi32>
    %c0_i32 = arith.constant 0 : i32
    %47 = vector.broadcast %c0_i32 : i32 to vector<48x128xi32>
    %48 = arith.cmpi sge, %46, %47 : vector<48x128xi32>
    %c64_i32 = arith.constant 64 : i32
    %49 = vector.broadcast %c64_i32 : i32 to vector<48x128xi32>
    %50 = arith.cmpi slt, %46, %49 : vector<48x128xi32>
    %51 = arith.andi %48, %50 : vector<48x128xi1>
    %cst_24 = arith.constant 0.000000e+00 : f32
    %52 = vector.broadcast %cst_24 : f32 to vector<48x128xf32>
    %53 = arith.select %51, %41, %52 : vector<48x128xi1>, vector<48x128xf32>
    %c0_25 = arith.constant 0 : index
    %c0_26 = arith.constant 0 : index
    %54 = vector.load %arg12[%c0_25, %c0_26] : memref<9x128xf32, #tpu.memory_space<vmem>>, vector<9x128xf32>
    %c0_27 = arith.constant 0 : index
    %c0_28 = arith.constant 0 : index
    %55 = vector.load %arg5[%c0_27, %c0_28] : memref<48x1xf32, #tpu.memory_space<vmem>>, vector<48x1xf32>
    %c0_29 = arith.constant 0 : index
    %c0_30 = arith.constant 0 : index
    %56 = vector.load %arg6[%c0_29, %c0_30] : memref<48x1xf32, #tpu.memory_space<vmem>>, vector<48x1xf32>
    %cst_31 = arith.constant 0.000000e+00 : f32
    %57 = vector.broadcast %cst_31 : f32 to vector<32x128xf32>
    %cst_32 = arith.constant 0.000000e+00 : f32
    %58 = vector.broadcast %cst_32 : f32 to vector<1x32xf32>
    %59 = vector.extract_strided_slice %53 {offsets = [0, 96], sizes = [47, 32], strides = [1, 1]} : vector<48x128xf32> to vector<47x32xf32>
    %60 = tpu.concatenate %58, %59 in 0 : vector<1x32xf32>, vector<47x32xf32> -> vector<48x32xf32>
    %61 = vector.broadcast %55 : vector<48x1xf32> to vector<48x32xf32>
    %62 = arith.mulf %60, %61 : vector<48x32xf32>
    %63 = vector.extract_strided_slice %53 {offsets = [0, 0], sizes = [48, 96], strides = [1, 1]} : vector<48x128xf32> to vector<48x96xf32>
    %64 = tpu.concatenate %62, %63 in 1 : vector<48x32xf32>, vector<48x96xf32> -> vector<48x128xf32>
    %65 = vector.extract_strided_slice %64 {offsets = [4, 0], sizes = [32, 128], strides = [1, 1]} : vector<48x128xf32> to vector<32x128xf32>
    %66 = vector.extract_strided_slice %54 {offsets = [0, 0], sizes = [1, 128], strides = [1, 1]} : vector<9x128xf32> to vector<1x128xf32>
    %67 = vector.broadcast %66 : vector<1x128xf32> to vector<32x128xf32>
    %68 = arith.mulf %65, %67 : vector<32x128xf32>
    %69 = arith.addf %57, %68 : vector<32x128xf32>
    %70 = vector.extract_strided_slice %64 {offsets = [8, 0], sizes = [32, 128], strides = [1, 1]} : vector<48x128xf32> to vector<32x128xf32>
    %71 = vector.extract_strided_slice %54 {offsets = [3, 0], sizes = [1, 128], strides = [1, 1]} : vector<9x128xf32> to vector<1x128xf32>
    %72 = vector.broadcast %71 : vector<1x128xf32> to vector<32x128xf32>
    %73 = arith.mulf %70, %72 : vector<32x128xf32>
    %74 = arith.addf %69, %73 : vector<32x128xf32>
    %75 = vector.extract_strided_slice %64 {offsets = [12, 0], sizes = [32, 128], strides = [1, 1]} : vector<48x128xf32> to vector<32x128xf32>
    %76 = vector.extract_strided_slice %54 {offsets = [6, 0], sizes = [1, 128], strides = [1, 1]} : vector<9x128xf32> to vector<1x128xf32>
    %77 = vector.broadcast %76 : vector<1x128xf32> to vector<32x128xf32>
    %78 = arith.mulf %75, %77 : vector<32x128xf32>
    %79 = arith.addf %74, %78 : vector<32x128xf32>
    %80 = vector.extract_strided_slice %53 {offsets = [4, 0], sizes = [32, 128], strides = [1, 1]} : vector<48x128xf32> to vector<32x128xf32>
    %81 = vector.extract_strided_slice %54 {offsets = [1, 0], sizes = [1, 128], strides = [1, 1]} : vector<9x128xf32> to vector<1x128xf32>
    %82 = vector.broadcast %81 : vector<1x128xf32> to vector<32x128xf32>
    %83 = arith.mulf %80, %82 : vector<32x128xf32>
    %84 = arith.addf %79, %83 : vector<32x128xf32>
    %85 = vector.extract_strided_slice %53 {offsets = [8, 0], sizes = [32, 128], strides = [1, 1]} : vector<48x128xf32> to vector<32x128xf32>
    %86 = vector.extract_strided_slice %54 {offsets = [4, 0], sizes = [1, 128], strides = [1, 1]} : vector<9x128xf32> to vector<1x128xf32>
    %87 = vector.broadcast %86 : vector<1x128xf32> to vector<32x128xf32>
    %88 = arith.mulf %85, %87 : vector<32x128xf32>
    %89 = arith.addf %84, %88 : vector<32x128xf32>
    %90 = vector.extract_strided_slice %53 {offsets = [12, 0], sizes = [32, 128], strides = [1, 1]} : vector<48x128xf32> to vector<32x128xf32>
    %91 = vector.extract_strided_slice %54 {offsets = [7, 0], sizes = [1, 128], strides = [1, 1]} : vector<9x128xf32> to vector<1x128xf32>
    %92 = vector.broadcast %91 : vector<1x128xf32> to vector<32x128xf32>
    %93 = arith.mulf %90, %92 : vector<32x128xf32>
    %94 = arith.addf %89, %93 : vector<32x128xf32>
    %95 = vector.extract_strided_slice %53 {offsets = [1, 0], sizes = [47, 32], strides = [1, 1]} : vector<48x128xf32> to vector<47x32xf32>
    %cst_33 = arith.constant 0.000000e+00 : f32
    %96 = vector.broadcast %cst_33 : f32 to vector<1x32xf32>
    %97 = tpu.concatenate %95, %96 in 0 : vector<47x32xf32>, vector<1x32xf32> -> vector<48x32xf32>
    %98 = vector.broadcast %56 : vector<48x1xf32> to vector<48x32xf32>
    %99 = arith.mulf %97, %98 : vector<48x32xf32>
    %100 = vector.extract_strided_slice %53 {offsets = [0, 32], sizes = [48, 96], strides = [1, 1]} : vector<48x128xf32> to vector<48x96xf32>
    %101 = tpu.concatenate %100, %99 in 1 : vector<48x96xf32>, vector<48x32xf32> -> vector<48x128xf32>
    %102 = vector.extract_strided_slice %101 {offsets = [4, 0], sizes = [32, 128], strides = [1, 1]} : vector<48x128xf32> to vector<32x128xf32>
    %103 = vector.extract_strided_slice %54 {offsets = [2, 0], sizes = [1, 128], strides = [1, 1]} : vector<9x128xf32> to vector<1x128xf32>
    %104 = vector.broadcast %103 : vector<1x128xf32> to vector<32x128xf32>
    %105 = arith.mulf %102, %104 : vector<32x128xf32>
    %106 = arith.addf %94, %105 : vector<32x128xf32>
    %107 = vector.extract_strided_slice %101 {offsets = [8, 0], sizes = [32, 128], strides = [1, 1]} : vector<48x128xf32> to vector<32x128xf32>
    %108 = vector.extract_strided_slice %54 {offsets = [5, 0], sizes = [1, 128], strides = [1, 1]} : vector<9x128xf32> to vector<1x128xf32>
    %109 = vector.broadcast %108 : vector<1x128xf32> to vector<32x128xf32>
    %110 = arith.mulf %107, %109 : vector<32x128xf32>
    %111 = arith.addf %106, %110 : vector<32x128xf32>
    %112 = vector.extract_strided_slice %101 {offsets = [12, 0], sizes = [32, 128], strides = [1, 1]} : vector<48x128xf32> to vector<32x128xf32>
    %113 = vector.extract_strided_slice %54 {offsets = [8, 0], sizes = [1, 128], strides = [1, 1]} : vector<9x128xf32> to vector<1x128xf32>
    %114 = vector.broadcast %113 : vector<1x128xf32> to vector<32x128xf32>
    %115 = arith.mulf %112, %114 : vector<32x128xf32>
    %116 = arith.addf %111, %115 : vector<32x128xf32>
    %c0_34 = arith.constant 0 : index
    %c0_35 = arith.constant 0 : index
    %117 = vector.load %arg13[%c0_34, %c0_35] : memref<1x128xf32, #tpu.memory_space<vmem>>, vector<1x128xf32>
    %118 = vector.broadcast %117 : vector<1x128xf32> to vector<32x128xf32>
    %119 = arith.addf %116, %118 : vector<32x128xf32>
    %c0_36 = arith.constant 0 : index
    %c0_37 = arith.constant 0 : index
    %120 = vector.load %arg7[%c0_36, %c0_37] : memref<128x128xbf16, #tpu.memory_space<vmem>>, vector<128x128xbf16>
    %c0_38 = arith.constant 0 : index
    %c0_39 = arith.constant 0 : index
    %121 = vector.load %arg14[%c0_38, %c0_39] : memref<128x128xbf16, #tpu.memory_space<vmem>>, vector<128x128xbf16>
    %c0_40 = arith.constant 0 : index
    %c0_41 = arith.constant 0 : index
    %122 = vector.load %arg15[%c0_40, %c0_41] : memref<1x128xf32, #tpu.memory_space<vmem>>, vector<1x128xf32>
    %c0_42 = arith.constant 0 : index
    %c0_43 = arith.constant 0 : index
    %123 = vector.load %arg16[%c0_42, %c0_43] : memref<256x128xbf16, #tpu.memory_space<vmem>>, vector<256x128xbf16>
    %c0_44 = arith.constant 0 : index
    %c0_45 = arith.constant 0 : index
    %124 = vector.load %arg17[%c0_44, %c0_45] : memref<1x128xf32, #tpu.memory_space<vmem>>, vector<1x128xf32>
    %125 = arith.truncf %119 : vector<32x128xf32> to vector<32x128xbf16>
    %126 = arith.mulf %119, %119 : vector<32x128xf32>
    %127 = arith.truncf %126 : vector<32x128xf32> to vector<32x128xbf16>
    %cst_46 = arith.constant dense<0.000000e+00> : vector<32x128xf32>
    %128 = tpu.matmul %125, %120, %cst_46 {dimension_numbers = #tpu.dot_dimension_numbers<[1], [0], [0], [1], [0, 0, 1, 1], [], []>} : vector<32x128xbf16>, vector<128x128xbf16>, vector<32x128xf32> -> vector<32x128xf32>
    %cst_47 = arith.constant dense<0.000000e+00> : vector<32x128xf32>
    %129 = tpu.matmul %127, %120, %cst_47 {dimension_numbers = #tpu.dot_dimension_numbers<[1], [0], [0], [1], [0, 0, 1, 1], [], []>} : vector<32x128xbf16>, vector<128x128xbf16>, vector<32x128xf32> -> vector<32x128xf32>
    %130 = arith.mulf %128, %128 : vector<32x128xf32>
    %131 = arith.subf %129, %130 : vector<32x128xf32>
    %cst_48 = arith.constant 0.000000e+00 : f32
    %132 = vector.broadcast %cst_48 : f32 to vector<32x128xf32>
    %133 = arith.maximumf %131, %132 : vector<32x128xf32>
    %134 = arith.subf %119, %128 : vector<32x128xf32>
    %cst_49 = arith.constant 9.99999974E-6 : f32
    %135 = vector.broadcast %cst_49 : f32 to vector<32x128xf32>
    %136 = arith.addf %133, %135 : vector<32x128xf32>
    %137 = math.rsqrt %136 : vector<32x128xf32>
    %138 = arith.mulf %134, %137 : vector<32x128xf32>
    %139 = arith.truncf %138 : vector<32x128xf32> to vector<32x128xbf16>
    %cst_50 = arith.constant dense<0.000000e+00> : vector<32x128xf32>
    %140 = tpu.matmul %139, %121, %cst_50 {dimension_numbers = #tpu.dot_dimension_numbers<[1], [0], [0], [1], [0, 0, 1, 1], [], []>} : vector<32x128xbf16>, vector<128x128xbf16>, vector<32x128xf32> -> vector<32x128xf32>
    %141 = vector.broadcast %122 : vector<1x128xf32> to vector<32x128xf32>
    %142 = arith.addf %140, %141 : vector<32x128xf32>
    %143 = arith.negf %142 : vector<32x128xf32>
    %144 = math.exp %143 : vector<32x128xf32>
    %cst_51 = arith.constant 1.000000e+00 : f32
    %145 = vector.broadcast %cst_51 : f32 to vector<32x128xf32>
    %146 = arith.addf %145, %144 : vector<32x128xf32>
    %147 = arith.divf %145, %146 : vector<32x128xf32>
    %148 = arith.mulf %142, %147 : vector<32x128xf32>
    %149 = arith.truncf %148 : vector<32x128xf32> to vector<32x128xbf16>
    %150 = tpu.concatenate %139, %149 in 1 : vector<32x128xbf16>, vector<32x128xbf16> -> vector<32x256xbf16>
    %cst_52 = arith.constant dense<0.000000e+00> : vector<32x128xf32>
    %151 = tpu.matmul %150, %123, %cst_52 {dimension_numbers = #tpu.dot_dimension_numbers<[1], [0], [0], [1], [0, 0, 1, 1], [], []>} : vector<32x256xbf16>, vector<256x128xbf16>, vector<32x128xf32> -> vector<32x128xf32>
    %152 = vector.broadcast %124 : vector<1x128xf32> to vector<32x128xf32>
    %153 = arith.addf %151, %152 : vector<32x128xf32>
    %154 = arith.addf %153, %119 : vector<32x128xf32>
    %c0_53 = arith.constant 0 : index
    %c0_54 = arith.constant 0 : index
    %c0_55 = arith.constant 0 : index
    %155 = vector.load %arg18[%c0_53, %c0_54, %c0_55] : memref<1x32x128xf32, #tpu.memory_space<vmem>>, vector<1x32x128xf32>
    %156 = vector.shape_cast %155 : vector<1x32x128xf32> to vector<32x128xf32>
    %157 = vector.shape_cast %154 : vector<32x128xf32> to vector<1x32x128xf32>
    tpu.vector_store %arg18[%c0_53, %c0_54, %c0_55], %157 {strides = array<i32>} : memref<1x32x128xf32, #tpu.memory_space<vmem>>, vector<1x32x128xf32>,
    return
  }
  func.func @transform_0(%arg0: i32, %arg1: i32) -> (i32, i32, i32) {
    %c4_i32 = arith.constant 4 : i32
    %0 = arith.muli %arg1, %c4_i32 : i32
    %c1_i32 = arith.constant 1 : i32
    %1 = arith.subi %0, %c1_i32 : i32
    %c0_i32 = arith.constant 0 : i32
    %2 = arith.maxsi %1, %c0_i32 : i32
    %c0_i32_0 = arith.constant 0 : i32
    %c0_i32_1 = arith.constant 0 : i32
    return %arg0, %2, %c0_i32_0 : i32, i32, i32
  }
  func.func @transform_1(%arg0: i32, %arg1: i32) -> (i32, i32, i32) {
    %c0_i32 = arith.constant 0 : i32
    %c0_i32_0 = arith.constant 0 : i32
    return %arg0, %arg1, %c0_i32 : i32, i32, i32
  }
  func.func @transform_2(%arg0: i32, %arg1: i32) -> (i32, i32, i32) {
    %c1_i32 = arith.constant 1 : i32
    %0 = arith.addi %arg1, %c1_i32 : i32
    %c4_i32 = arith.constant 4 : i32
    %1 = arith.muli %0, %c4_i32 : i32
    %c7_i32 = arith.constant 7 : i32
    %2 = arith.minsi %1, %c7_i32 : i32
    %c0_i32 = arith.constant 0 : i32
    %c0_i32_0 = arith.constant 0 : i32
    return %arg0, %2, %c0_i32 : i32, i32, i32
  }
  func.func @transform_3(%arg0: i32, %arg1: i32) -> (i32, i32) {
    %c0_i32 = arith.constant 0 : i32
    %c0_i32_0 = arith.constant 0 : i32
    %c0_i32_1 = arith.constant 0 : i32
    return %c0_i32, %c0_i32_0 : i32, i32
  }
  func.func @transform_4(%arg0: i32, %arg1: i32) -> (i32, i32) {
    %c0_i32 = arith.constant 0 : i32
    %c0_i32_0 = arith.constant 0 : i32
    %c0_i32_1 = arith.constant 0 : i32
    return %c0_i32, %c0_i32_0 : i32, i32
  }
  func.func @transform_5(%arg0: i32, %arg1: i32) -> (i32, i32) {
    %c0_i32 = arith.constant 0 : i32
    %c0_i32_0 = arith.constant 0 : i32
    %c0_i32_1 = arith.constant 0 : i32
    return %c0_i32, %c0_i32_0 : i32, i32
  }
  func.func @transform_6(%arg0: i32, %arg1: i32) -> (i32, i32) {
    %c0_i32 = arith.constant 0 : i32
    %c0_i32_0 = arith.constant 0 : i32
    %c0_i32_1 = arith.constant 0 : i32
    return %c0_i32, %c0_i32_0 : i32, i32
  }
  func.func @transform_7(%arg0: i32, %arg1: i32) -> (i32, i32) {
    %c0_i32 = arith.constant 0 : i32
    %c0_i32_0 = arith.constant 0 : i32
    %c0_i32_1 = arith.constant 0 : i32
    return %c0_i32, %c0_i32_0 : i32, i32
  }
  func.func @transform_8(%arg0: i32, %arg1: i32) -> (i32, i32) {
    %c0_i32 = arith.constant 0 : i32
    %c0_i32_0 = arith.constant 0 : i32
    %c0_i32_1 = arith.constant 0 : i32
    return %c0_i32, %c0_i32_0 : i32, i32
  }
  func.func @transform_9(%arg0: i32, %arg1: i32) -> (i32, i32) {
    %c0_i32 = arith.constant 0 : i32
    %c0_i32_0 = arith.constant 0 : i32
    %c0_i32_1 = arith.constant 0 : i32
    return %c0_i32, %c0_i32_0 : i32, i32
  }
  func.func @transform_10(%arg0: i32, %arg1: i32) -> (i32, i32) {
    %c0_i32 = arith.constant 0 : i32
    %c0_i32_0 = arith.constant 0 : i32
    %c0_i32_1 = arith.constant 0 : i32
    return %c0_i32, %c0_i32_0 : i32, i32
  }
  func.func @transform_11(%arg0: i32, %arg1: i32) -> (i32, i32) {
    %c0_i32 = arith.constant 0 : i32
    %c0_i32_0 = arith.constant 0 : i32
    %c0_i32_1 = arith.constant 0 : i32
    return %c0_i32, %c0_i32_0 : i32, i32
  }
  func.func @transform_12(%arg0: i32, %arg1: i32) -> (i32, i32) {
    %c0_i32 = arith.constant 0 : i32
    %c0_i32_0 = arith.constant 0 : i32
    %c0_i32_1 = arith.constant 0 : i32
    return %c0_i32, %c0_i32_0 : i32, i32
  }
  func.func @transform_13(%arg0: i32, %arg1: i32) -> (i32, i32) {
    %c0_i32 = arith.constant 0 : i32
    %c0_i32_0 = arith.constant 0 : i32
    %c0_i32_1 = arith.constant 0 : i32
    return %c0_i32, %c0_i32_0 : i32, i32
  }
  func.func @transform_14(%arg0: i32, %arg1: i32) -> (i32, i32) {
    %c0_i32 = arith.constant 0 : i32
    %c0_i32_0 = arith.constant 0 : i32
    %c0_i32_1 = arith.constant 0 : i32
    return %c0_i32, %c0_i32_0 : i32, i32
  }
  func.func @transform_15(%arg0: i32, %arg1: i32) -> (i32, i32) {
    %c0_i32 = arith.constant 0 : i32
    %c0_i32_0 = arith.constant 0 : i32
    %c0_i32_1 = arith.constant 0 : i32
    return %c0_i32, %c0_i32_0 : i32, i32
  }
  func.func @transform_16(%arg0: i32, %arg1: i32) -> (i32, i32, i32) {
    %c0_i32 = arith.constant 0 : i32
    %c0_i32_0 = arith.constant 0 : i32
    return %arg0, %arg1, %c0_i32 : i32, i32, i32
  }
}

</mosaic_0001>

<llo_original>
// kernel: tpu_custom_call.1
$region0: #{tpu_custom_call.1}
  #allocation0 [shape = 'u32[]', space=smem, size = 0x4, offset = 0x4, fixed_abs, tag = 'smem constant byte address 0x4 - core index']
  #allocation1 [shape = 'u32[144,128]{1,0:T(1,128)}', space=vmem, size = 0x12000, scoped, tag = 'internal scratch']
  %s0 = inlined_call_operand.hbm [shape: f32[2,64,128], index: 0, kind: input, shape index: {}]
  %s1 = inlined_call_operand.hbm [shape: f32[2,64,128], index: 1, kind: input, shape index: {}]
  %s2 = inlined_call_operand.hbm [shape: f32[2,64,128], index: 2, kind: input, shape index: {}]
  %s3 = inlined_call_operand.vmem [shape: f32[48,1], index: 3, kind: input, shape index: {}]
  %s4 = inlined_call_operand.vmem [shape: f32[48,1], index: 4, kind: input, shape index: {}]
  %s5 = inlined_call_operand.hbm [shape: bf16[128,128], index: 5, kind: input, shape index: {}]
  %s6 = inlined_call_operand.hbm [shape: bf16[128,128], index: 6, kind: input, shape index: {}]
  %s7 = inlined_call_operand.hbm [shape: f32[1,128], index: 7, kind: input, shape index: {}]
  %s8 = inlined_call_operand.vmem [shape: bf16[256,128], index: 8, kind: input, shape index: {}]
  %s9 = inlined_call_operand.vmem [shape: f32[1,128], index: 9, kind: input, shape index: {}]
  %s10 = inlined_call_operand.hbm [shape: f32[9,128], index: 10, kind: input, shape index: {}]
  %s11 = inlined_call_operand.vmem [shape: f32[1,128], index: 11, kind: input, shape index: {}]
  %s12 = inlined_call_operand.hbm [shape: bf16[128,128], index: 12, kind: input, shape index: {}]
  %s13 = inlined_call_operand.vmem [shape: f32[1,128], index: 13, kind: input, shape index: {}]
  %s14 = inlined_call_operand.hbm [shape: bf16[256,128], index: 14, kind: input, shape index: {}]
  %s15 = inlined_call_operand.vmem [shape: f32[1,128], index: 15, kind: input, shape index: {}]
  %s16 = inlined_call_operand.hbm [shape: f32[2,64,128], index: 16, kind: output, shape index: {}]
  %s17 = sld [smem:[#allocation0]]
  $region133: #{tpu_custom_call.1} parent=0
    _
  %s19 = ssub.s32 1, %s17
  %s20 = scalar_select 0, %s19, %s17
  $region1: #{tpu_custom_call.1} parent=0
    #allocation2 [shape = 'u8[8192]{0}', space=vmem, size = 0x2000, scoped, tag = 'input window, operand 0']
    #allocation3 [shape = 's32[2]{0}', space=sflag, size = 0x8, scoped, tag = 'scoped memory for tpu_custom_call.1']
    #allocation4 [shape = 's32[2]{0}', space=sflag, size = 0x8, scoped, tag = 'scoped memory for tpu_custom_call.1']
    #allocation5 [shape = 'u8[32768]{0}', space=vmem, size = 0x8000, scoped, tag = 'input window, operand 1']
    #allocation6 [shape = 's32[2]{0}', space=sflag, size = 0x8, scoped, tag = 'scoped memory for tpu_custom_call.1']
    #allocation7 [shape = 'u8[8192]{0}', space=vmem, size = 0x2000, scoped, tag = 'input window, operand 2']
    #allocation8 [shape = 'u8[32768]{0}', space=vmem, size = 0x8000, scoped, tag = 'input window, operand 5, single buffered']
    #allocation9 [shape = 's32[1]{0}', space=sflag, size = 0x4, scoped, tag = 'scoped memory for tpu_custom_call.1']
    #allocation10 [shape = 'u8[32768]{0}', space=vmem, size = 0x8000, scoped, tag = 'input window, operand 6, single buffered']
    #allocation11 [shape = 'u8[512]{0}', space=vmem, size = 0x400, scoped, tag = 'input window, operand 7, single buffered']
    #allocation12 [shape = 's32[1]{0}', space=sflag, size = 0x4, scoped, tag = 'scoped memory for tpu_custom_call.1']
    #allocation13 [shape = 'u8[8192]{0}', space=vmem, size = 0x2000, scoped, tag = 'input window, operand 10, single buffered']
    #allocation14 [shape = 'u8[32768]{0}', space=vmem, size = 0x8000, scoped, tag = 'input window, operand 12, single buffered']
    #allocation15 [shape = 's32[1]{0}', space=sflag, size = 0x4, scoped, tag = 'scoped memory for tpu_custom_call.1']
    #allocation16 [shape = 'u8[65536]{0}', space=vmem, size = 0x10000, scoped, tag = 'input window, operand 14, single buffered']
    #allocation17 [shape = 'u8[32768]{0}', space=vmem, size = 0x8000, scoped, tag = 'output window, operand 0']
    %21 = vsyncpa [#allocation3], 0
    %s22 = scalar_lea.sflag [#allocation3], 1
    %23 = vsyncpa %s22, 0
    %24 = vsyncpa [#allocation6], 0
    %s25 = scalar_lea.sflag [#allocation6], 1
    %26 = vsyncpa %s25, 0
    %27 = vsyncpa [#allocation9], 0
    %28 = vsyncpa [#allocation12], 0
    %29 = vsyncpa [#allocation15], 0
    %30 = vsyncpa [#allocation4], 0
    %s31 = scalar_lea.sflag [#allocation4], 1
    %32 = vsyncpa %s31, 0
    loop: start=0, step=1, limit=6
    $region2: #{tpu_custom_call.1} parent=1 // loop_pre_header
      _
    $region3: #{tpu_custom_call.1} parent=1 // loop_header
      %s34 = sphi 0, %s38
      %p35 = scmp.ge.s32.totalorder %s34, 6
      %s41 = sphi 0, %s53
      %s42 = sphi 0, %s49
      %s43 = sphi 0, %s41
      %s44 = sphi 0, %s42
      %s45 = sphi 0, %s43
      %s46 = sphi 0, %s44
      %s66 = sphi 0, %s68
      %s69 = sphi 0, %s66
      %s70 = sphi 0, %s69
      %s86 = sphi 0, %s70
      %s94 = sphi 0, %s96
      %s97 = sphi 0, %s94
      %s98 = sphi 0, %s97
      %s114 = sphi 0, %s98
      %s130 = sphi 0, %s132
      %s133 = sphi 0, %s130
      %s134 = sphi 0, %s133
      %s150 = sphi 0, %s134
      %s154 = sphi 0, %s154
      %s156 = sphi 0, %s154
      %s157 = sphi 0, %s156
      %s171 = sphi 0, %s157
      %s175 = sphi 0, %s175
      %s177 = sphi 0, %s175
      %s178 = sphi 0, %s177
      %s192 = sphi 0, %s178
      %s196 = sphi 0, %s196
      %s198 = sphi 0, %s196
      %s199 = sphi 0, %s198
      %s213 = sphi 0, %s199
      %s217 = sphi 0, %s217
      %s219 = sphi 0, %s217
      %s220 = sphi 0, %s219
      %s234 = sphi 0, %s220
      %s238 = sphi 0, %s238
      %s240 = sphi 0, %s238
      %s241 = sphi 0, %s240
      %s255 = sphi 0, %s241
      %s259 = sphi 0, %s259
      %s261 = sphi 0, %s259
      %s262 = sphi 0, %s261
      %s276 = sphi 0, %s262
      %s280 = sphi 0, %s280
      %s282 = sphi 0, %s280
      %s283 = sphi 0, %s282
      %s297 = sphi 0, %s283
      %s301 = sphi 0, %s301
      %s303 = sphi 0, %s301
      %s304 = sphi 0, %s303
      %s318 = sphi 0, %s304
      %s322 = sphi 0, %s322
      %s324 = sphi 0, %s322
      %s325 = sphi 0, %s324
      %s339 = sphi 0, %s325
      %s343 = sphi 0, %s343
      %s345 = sphi 0, %s343
      %s346 = sphi 0, %s345
      %s360 = sphi 0, %s346
      %s364 = sphi 0, %s364
      %s366 = sphi 0, %s364
      %s367 = sphi 0, %s366
      %s381 = sphi 0, %s367
      %s385 = sphi 0, %s385
      %s387 = sphi 0, %s385
      %s388 = sphi 0, %s387
      %s402 = sphi 0, %s388
      %s406 = sphi 0, %s406
      %s408 = sphi 0, %s406
      %s409 = sphi 0, %s408
      %s423 = sphi 0, %s409
      %s431 = sphi 0, %s433
      %s434 = sphi 0, %s431
      %s435 = sphi 0, %s434
      %s451 = sphi 0, %s435
    $region4: #{tpu_custom_call.1} parent=1 // loop_header_branch
      %37 = sbr.rel (%p35) target = $region8
    $region5: #{tpu_custom_call.1} parent=1 // loop_body
      %s39 = ssub.s32 %s34, 1
      %s40 = ssub.s32 %s34, 2
      %s47 = sadd.s32 1, %s42
      %p48 = scmp.ge.s32.totalorder %s47, 2
      %s49 = scalar_select %p48, 0, %s47
      %s50 = sadd.s32 1, %s41
      %s51 = scalar_select %p48, %s50, %s41
      %p52 = scmp.ge.s32.totalorder %s51, 2
      %s53 = scalar_select %p52, 0, %s51
      %s54 = smul.u32 %s42, 4
      %s55 = ssub.s32 %s54, 1
      %p56 = scmp.gt.s32.totalorder %s55, 0
      %s57 = scalar_select %p56, %s55, 0
      %s58 = smul.u32 %s49, 4
      %s59 = ssub.s32 %s58, 1
      %p60 = scmp.gt.s32.totalorder %s59, 0
      %s61 = scalar_select %p60, %s59, 0
      %s62 = ssub.s32 %s41, %s53
      %s63 = ssub.s32 %s57, %s61
      %s64 = sor.u32 %s62, %s63
      %p65 = scmp.eq.s32.totalorder %s64, 0
      %s67 = sadd.s32 %s66, 1
      %s68 = scalar_select %p65, %s66, %s67
      %p71 = pneg %p65
      %p72 = scmp.eq.s32.totalorder %s34, 3
      %p73 = por %p71, %p72
      %p74 = scmp.ne.s32.totalorder %s66, %s69
      %p75 = scmp.eq.s32.totalorder %s34, 0
      %p76 = por %p74, %p75
      %p77 = scmp.ne.s32.totalorder %s66, %s69
      %p78 = scmp.eq.s32.totalorder %s39, 3
      %p79 = por %p77, %p78
      %p80 = scmp.ne.s32.totalorder %s69, %s70
      %p81 = scmp.eq.s32.totalorder %s39, 0
      %p82 = por %p80, %p81
      %p83 = scmp.ne.s32.totalorder %s69, %s70
      %p84 = scmp.eq.s32.totalorder %s40, 3
      %p85 = por %p83, %p84
      %p87 = scmp.ne.s32.totalorder %s70, %s86
      %p88 = scmp.eq.s32.totalorder %s40, 0
      %p89 = por %p87, %p88
      %s90 = ssub.s32 %s41, %s53
      %s91 = ssub.s32 %s42, %s49
      %s92 = sor.u32 %s90, %s91
      %p93 = scmp.eq.s32.totalorder %s92, 0
      %s95 = sadd.s32 %s94, 1
      %s96 = scalar_select %p93, %s94, %s95
      %p99 = pneg %p93
      %p100 = scmp.eq.s32.totalorder %s34, 3
      %p101 = por %p99, %p100
      %p102 = scmp.ne.s32.totalorder %s94, %s97
      %p103 = scmp.eq.s32.totalorder %s34, 0
      %p104 = por %p102, %p103
      %p105 = scmp.ne.s32.totalorder %s94, %s97
      %p106 = scmp.eq.s32.totalorder %s39, 3
      %p107 = por %p105, %p106
      %p108 = scmp.ne.s32.totalorder %s97, %s98
      %p109 = scmp.eq.s32.totalorder %s39, 0
      %p110 = por %p108, %p109
      %p111 = scmp.ne.s32.totalorder %s97, %s98
      %p112 = scmp.eq.s32.totalorder %s40, 3
      %p113 = por %p111, %p112
      %p115 = scmp.ne.s32.totalorder %s98, %s114
      %p116 = scmp.eq.s32.totalorder %s40, 0
      %p117 = por %p115, %p116
      %s118 = sadd.s32 %s42, 1
      %s119 = smul.u32 %s118, 4
      %p120 = scmp.lt.s32.totalorder %s119, 7
      %s121 = scalar_select %p120, %s119, 7
      %s122 = sadd.s32 %s49, 1
      %s123 = smul.u32 %s122, 4
      %p124 = scmp.lt.s32.totalorder %s123, 7
      %s125 = scalar_select %p124, %s123, 7
      %s126 = ssub.s32 %s41, %s53
      %s127 = ssub.s32 %s121, %s125
      %s128 = sor.u32 %s126, %s127
      %p129 = scmp.eq.s32.totalorder %s128, 0
      %s131 = sadd.s32 %s130, 1
      %s132 = scalar_select %p129, %s130, %s131
      %p135 = pneg %p129
      %p136 = scmp.eq.s32.totalorder %s34, 3
      %p137 = por %p135, %p136
      %p138 = scmp.ne.s32.totalorder %s130, %s133
      %p139 = scmp.eq.s32.totalorder %s34, 0
      %p140 = por %p138, %p139
      %p141 = scmp.ne.s32.totalorder %s130, %s133
      %p142 = scmp.eq.s32.totalorder %s39, 3
      %p143 = por %p141, %p142
      %p144 = scmp.ne.s32.totalorder %s133, %s134
      %p145 = scmp.eq.s32.totalorder %s39, 0
      %p146 = por %p144, %p145
      %p147 = scmp.ne.s32.totalorder %s133, %s134
      %p148 = scmp.eq.s32.totalorder %s40, 3
      %p149 = por %p147, %p148
      %p151 = scmp.ne.s32.totalorder %s134, %s150
      %p152 = scmp.eq.s32.totalorder %s40, 0
      %p153 = por %p151, %p152
      %s155 = sadd.s32 %s154, 1
      %p158 = scmp.eq.s32.totalorder %s34, 3
      %p159 = scmp.ne.s32.totalorder %s154, %s156
      %p160 = scmp.eq.s32.totalorder %s34, 0
      %p161 = por %p159, %p160
      %p162 = scmp.ne.s32.totalorder %s154, %s156
      %p163 = scmp.eq.s32.totalorder %s39, 3
      %p164 = por %p162, %p163
      %p165 = scmp.ne.s32.totalorder %s156, %s157
      %p166 = scmp.eq.s32.totalorder %s39, 0
      %p167 = por %p165, %p166
      %p168 = scmp.ne.s32.totalorder %s156, %s157
      %p169 = scmp.eq.s32.totalorder %s40, 3
      %p170 = por %p168, %p169
      %p172 = scmp.ne.s32.totalorder %s157, %s171
      %p173 = scmp.eq.s32.totalorder %s40, 0
      %p174 = por %p172, %p173
      %s176 = sadd.s32 %s175, 1
      %p179 = scmp.eq.s32.totalorder %s34, 3
      %p180 = scmp.ne.s32.totalorder %s175, %s177
      %p181 = scmp.eq.s32.totalorder %s34, 0
      %p182 = por %p180, %p181
      %p183 = scmp.ne.s32.totalorder %s175, %s177
      %p184 = scmp.eq.s32.totalorder %s39, 3
      %p185 = por %p183, %p184
      %p186 = scmp.ne.s32.totalorder %s177, %s178
      %p187 = scmp.eq.s32.totalorder %s39, 0
      %p188 = por %p186, %p187
      %p189 = scmp.ne.s32.totalorder %s177, %s178
      %p190 = scmp.eq.s32.totalorder %s40, 3
      %p191 = por %p189, %p190
      %p193 = scmp.ne.s32.totalorder %s178, %s192
      %p194 = scmp.eq.s32.totalorder %s40, 0
      %p195 = por %p193, %p194
      %s197 = sadd.s32 %s196, 1
      %p200 = scmp.eq.s32.totalorder %s34, 3
      %p201 = scmp.ne.s32.totalorder %s196, %s198
      %p202 = scmp.eq.s32.totalorder %s34, 0
      %p203 = por %p201, %p202
      %p204 = scmp.ne.s32.totalorder %s196, %s198
      %p205 = scmp.eq.s32.totalorder %s39, 3
      %p206 = por %p204, %p205
      %p207 = scmp.ne.s32.totalorder %s198, %s199
      %p208 = scmp.eq.s32.totalorder %s39, 0
      %p209 = por %p207, %p208
      %p210 = scmp.ne.s32.totalorder %s198, %s199
      %p211 = scmp.eq.s32.totalorder %s40, 3
      %p212 = por %p210, %p211
      %p214 = scmp.ne.s32.totalorder %s199, %s213
      %p215 = scmp.eq.s32.totalorder %s40, 0
      %p216 = por %p214, %p215
      %s218 = sadd.s32 %s217, 1
      %p221 = scmp.eq.s32.totalorder %s34, 3
      %p222 = scmp.ne.s32.totalorder %s217, %s219
      %p223 = scmp.eq.s32.totalorder %s34, 0
      %p224 = por %p222, %p223
      %p225 = scmp.ne.s32.totalorder %s217, %s219
      %p226 = scmp.eq.s32.totalorder %s39, 3
      %p227 = por %p225, %p226
      %p228 = scmp.ne.s32.totalorder %s219, %s220
      %p229 = scmp.eq.s32.totalorder %s39, 0
      %p230 = por %p228, %p229
      %p231 = scmp.ne.s32.totalorder %s219, %s220
      %p232 = scmp.eq.s32.totalorder %s40, 3
      %p233 = por %p231, %p232
      %p235 = scmp.ne.s32.totalorder %s220, %s234
      %p236 = scmp.eq.s32.totalorder %s40, 0
      %p237 = por %p235, %p236
      %s239 = sadd.s32 %s238, 1
      %p242 = scmp.eq.s32.totalorder %s34, 3
      %p243 = scmp.ne.s32.totalorder %s238, %s240
      %p244 = scmp.eq.s32.totalorder %s34, 0
      %p245 = por %p243, %p244
      %p246 = scmp.ne.s32.totalorder %s238, %s240
      %p247 = scmp.eq.s32.totalorder %s39, 3
      %p248 = por %p246, %p247
      %p249 = scmp.ne.s32.totalorder %s240, %s241
      %p250 = scmp.eq.s32.totalorder %s39, 0
      %p251 = por %p249, %p250
      %p252 = scmp.ne.s32.totalorder %s240, %s241
      %p253 = scmp.eq.s32.totalorder %s40, 3
      %p254 = por %p252, %p253
      %p256 = scmp.ne.s32.totalorder %s241, %s255
      %p257 = scmp.eq.s32.totalorder %s40, 0
      %p258 = por %p256, %p257
      %s260 = sadd.s32 %s259, 1
      %p263 = scmp.eq.s32.totalorder %s34, 3
      %p264 = scmp.ne.s32.totalorder %s259, %s261
      %p265 = scmp.eq.s32.totalorder %s34, 0
      %p266 = por %p264, %p265
      %p267 = scmp.ne.s32.totalorder %s259, %s261
      %p268 = scmp.eq.s32.totalorder %s39, 3
      %p269 = por %p267, %p268
      %p270 = scmp.ne.s32.totalorder %s261, %s262
      %p271 = scmp.eq.s32.totalorder %s39, 0
      %p272 = por %p270, %p271
      %p273 = scmp.ne.s32.totalorder %s261, %s262
      %p274 = scmp.eq.s32.totalorder %s40, 3
      %p275 = por %p273, %p274
      %p277 = scmp.ne.s32.totalorder %s262, %s276
      %p278 = scmp.eq.s32.totalorder %s40, 0
      %p279 = por %p277, %p278
      %s281 = sadd.s32 %s280, 1
      %p284 = scmp.eq.s32.totalorder %s34, 3
      %p285 = scmp.ne.s32.totalorder %s280, %s282
      %p286 = scmp.eq.s32.totalorder %s34, 0
      %p287 = por %p285, %p286
      %p288 = scmp.ne.s32.totalorder %s280, %s282
      %p289 = scmp.eq.s32.totalorder %s39, 3
      %p290 = por %p288, %p289
      %p291 = scmp.ne.s32.totalorder %s282, %s283
      %p292 = scmp.eq.s32.totalorder %s39, 0
      %p293 = por %p291, %p292
      %p294 = scmp.ne.s32.totalorder %s282, %s283
      %p295 = scmp.eq.s32.totalorder %s40, 3
      %p296 = por %p294, %p295
      %p298 = scmp.ne.s32.totalorder %s283, %s297
      %p299 = scmp.eq.s32.totalorder %s40, 0
      %p300 = por %p298, %p299
      %s302 = sadd.s32 %s301, 1
      %p305 = scmp.eq.s32.totalorder %s34, 3
      %p306 = scmp.ne.s32.totalorder %s301, %s303
      %p307 = scmp.eq.s32.totalorder %s34, 0
      %p308 = por %p306, %p307
      %p309 = scmp.ne.s32.totalorder %s301, %s303
      %p310 = scmp.eq.s32.totalorder %s39, 3
      %p311 = por %p309, %p310
      %p312 = scmp.ne.s32.totalorder %s303, %s304
      %p313 = scmp.eq.s32.totalorder %s39, 0
      %p314 = por %p312, %p313
      %p315 = scmp.ne.s32.totalorder %s303, %s304
      %p316 = scmp.eq.s32.totalorder %s40, 3
      %p317 = por %p315, %p316
      %p319 = scmp.ne.s32.totalorder %s304, %s318
      %p320 = scmp.eq.s32.totalorder %s40, 0
      %p321 = por %p319, %p320
      %s323 = sadd.s32 %s322, 1
      %p326 = scmp.eq.s32.totalorder %s34, 3
      %p327 = scmp.ne.s32.totalorder %s322, %s324
      %p328 = scmp.eq.s32.totalorder %s34, 0
      %p329 = por %p327, %p328
      %p330 = scmp.ne.s32.totalorder %s322, %s324
      %p331 = scmp.eq.s32.totalorder %s39, 3
      %p332 = por %p330, %p331
      %p333 = scmp.ne.s32.totalorder %s324, %s325
      %p334 = scmp.eq.s32.totalorder %s39, 0
      %p335 = por %p333, %p334
      %p336 = scmp.ne.s32.totalorder %s324, %s325
      %p337 = scmp.eq.s32.totalorder %s40, 3
      %p338 = por %p336, %p337
      %p340 = scmp.ne.s32.totalorder %s325, %s339
      %p341 = scmp.eq.s32.totalorder %s40, 0
      %p342 = por %p340, %p341
      %s344 = sadd.s32 %s343, 1
      %p347 = scmp.eq.s32.totalorder %s34, 3
      %p348 = scmp.ne.s32.totalorder %s343, %s345
      %p349 = scmp.eq.s32.totalorder %s34, 0
      %p350 = por %p348, %p349
      %p351 = scmp.ne.s32.totalorder %s343, %s345
      %p352 = scmp.eq.s32.totalorder %s39, 3
      %p353 = por %p351, %p352
      %p354 = scmp.ne.s32.totalorder %s345, %s346
      %p355 = scmp.eq.s32.totalorder %s39, 0
      %p356 = por %p354, %p355
      %p357 = scmp.ne.s32.totalorder %s345, %s346
      %p358 = scmp.eq.s32.totalorder %s40, 3
      %p359 = por %p357, %p358
      %p361 = scmp.ne.s32.totalorder %s346, %s360
      %p362 = scmp.eq.s32.totalorder %s40, 0
      %p363 = por %p361, %p362
      %s365 = sadd.s32 %s364, 1
      %p368 = scmp.eq.s32.totalorder %s34, 3
      %p369 = scmp.ne.s32.totalorder %s364, %s366
      %p370 = scmp.eq.s32.totalorder %s34, 0
      %p371 = por %p369, %p370
      %p372 = scmp.ne.s32.totalorder %s364, %s366
      %p373 = scmp.eq.s32.totalorder %s39, 3
      %p374 = por %p372, %p373
      %p375 = scmp.ne.s32.totalorder %s366, %s367
      %p376 = scmp.eq.s32.totalorder %s39, 0
      %p377 = por %p375, %p376
      %p378 = scmp.ne.s32.totalorder %s366, %s367
      %p379 = scmp.eq.s32.totalorder %s40, 3
      %p380 = por %p378, %p379
      %p382 = scmp.ne.s32.totalorder %s367, %s381
      %p383 = scmp.eq.s32.totalorder %s40, 0
      %p384 = por %p382, %p383
      %s386 = sadd.s32 %s385, 1
      %p389 = scmp.eq.s32.totalorder %s34, 3
      %p390 = scmp.ne.s32.totalorder %s385, %s387
      %p391 = scmp.eq.s32.totalorder %s34, 0
      %p392 = por %p390, %p391
      %p393 = scmp.ne.s32.totalorder %s385, %s387
      %p394 = scmp.eq.s32.totalorder %s39, 3
      %p395 = por %p393, %p394
      %p396 = scmp.ne.s32.totalorder %s387, %s388
      %p397 = scmp.eq.s32.totalorder %s39, 0
      %p398 = por %p396, %p397
      %p399 = scmp.ne.s32.totalorder %s387, %s388
      %p400 = scmp.eq.s32.totalorder %s40, 3
      %p401 = por %p399, %p400
      %p403 = scmp.ne.s32.totalorder %s388, %s402
      %p404 = scmp.eq.s32.totalorder %s40, 0
      %p405 = por %p403, %p404
      %s407 = sadd.s32 %s406, 1
      %p410 = scmp.eq.s32.totalorder %s34, 3
      %p411 = scmp.ne.s32.totalorder %s406, %s408
      %p412 = scmp.eq.s32.totalorder %s34, 0
      %p413 = por %p411, %p412
      %p414 = scmp.ne.s32.totalorder %s406, %s408
      %p415 = scmp.eq.s32.totalorder %s39, 3
      %p416 = por %p414, %p415
      %p417 = scmp.ne.s32.totalorder %s408, %s409
      %p418 = scmp.eq.s32.totalorder %s39, 0
      %p419 = por %p417, %p418
      %p420 = scmp.ne.s32.totalorder %s408, %s409
      %p421 = scmp.eq.s32.totalorder %s40, 3
      %p422 = por %p420, %p421
      %p424 = scmp.ne.s32.totalorder %s409, %s423
      %p425 = scmp.eq.s32.totalorder %s40, 0
      %p426 = por %p424, %p425
      %s427 = ssub.s32 %s41, %s53
      %s428 = ssub.s32 %s42, %s49
      %s429 = sor.u32 %s427, %s428
      %p430 = scmp.eq.s32.totalorder %s429, 0
      %s432 = sadd.s32 %s431, 1
      %s433 = scalar_select %p430, %s431, %s432
      %p436 = pneg %p430
      %p437 = scmp.eq.s32.totalorder %s34, 3
      %p438 = por %p436, %p437
      %p439 = scmp.ne.s32.totalorder %s431, %s434
      %p440 = scmp.eq.s32.totalorder %s34, 0
      %p441 = por %p439, %p440
      %p442 = scmp.ne.s32.totalorder %s431, %s434
      %p443 = scmp.eq.s32.totalorder %s39, 3
      %p444 = por %p442, %p443
      %p445 = scmp.ne.s32.totalorder %s434, %s435
      %p446 = scmp.eq.s32.totalorder %s39, 0
      %p447 = por %p445, %p446
      %p448 = scmp.ne.s32.totalorder %s434, %s435
      %p449 = scmp.eq.s32.totalorder %s40, 3
      %p450 = por %p448, %p449
      %p452 = scmp.ne.s32.totalorder %s435, %s451
      %p453 = scmp.eq.s32.totalorder %s40, 0
      %p454 = por %p452, %p453
      %p455 = scmp.le.s32.totalorder 1, %s34
      %p456 = scmp.lt.s32.totalorder %s34, 5
      %p457 = pnand %p455, %p456
      %p458 = pneg %p457
      // Predicated region
      $region9: #{tpu_custom_call.1} parent=5 // pred_check
        _
      $region10: #{tpu_custom_call.1} parent=5 // pred_check_branch
        %460 = sbr.rel (%p457) target = $region12
      $region11: #{tpu_custom_call.1} parent=5 // pred_region
        %s461 = ssub.s32 %s34, 1
        // Predicated region
        $region13: #{tpu_custom_call.1} parent=11 // pred_check
          %p462 = pneg %p167
        $region14: #{tpu_custom_call.1} parent=11 // pred_check_branch
          %464 = sbr.rel (%p462) target = $region16
        $region15: #{tpu_custom_call.1} parent=11 // pred_region
          _
        $region16: #{tpu_custom_call.1} parent=11 // pred_fallthru
          _
        // Predicated region
        $region17: #{tpu_custom_call.1} parent=11 // pred_check
          %p465 = pneg %p188
        $region18: #{tpu_custom_call.1} parent=11 // pred_check_branch
          %467 = sbr.rel (%p465) target = $region20
        $region19: #{tpu_custom_call.1} parent=11 // pred_region
          _
        $region20: #{tpu_custom_call.1} parent=11 // pred_fallthru
          _
        // Predicated region
        $region21: #{tpu_custom_call.1} parent=11 // pred_check
          %p468 = pneg %p209
        $region22: #{tpu_custom_call.1} parent=11 // pred_check_branch
          %470 = sbr.rel (%p468) target = $region24
        $region23: #{tpu_custom_call.1} parent=11 // pred_region
          %s472 = ssub.s32 1024, 1024
          %473 = vsyncadd [#allocation9], %s472
          %s474 = sshll.u32 [#allocation8], 4
          %s475 = int_to_ptr.vmem [resolvable:$true] %s474
          %480 = dma.hbm_to_vmem [thread:$0]  %s5, 1024, %s475, [#allocation9], 64, 64, 4
        $region24: #{tpu_custom_call.1} parent=11 // pred_fallthru
          _
        // Predicated region
        $region25: #{tpu_custom_call.1} parent=11 // pred_check
          %p481 = pneg %p230
        $region26: #{tpu_custom_call.1} parent=11 // pred_check_branch
          %483 = sbr.rel (%p481) target = $region28
        $region27: #{tpu_custom_call.1} parent=11 // pred_region
          %s485 = ssub.s32 1024, 1024
          %486 = vsyncadd [#allocation9], %s485
          %s487 = sshll.u32 [#allocation10], 4
          %s488 = int_to_ptr.vmem [resolvable:$true] %s487
          %493 = dma.hbm_to_vmem [thread:$0]  %s6, 1024, %s488, [#allocation9], 64, 64, 4
        $region28: #{tpu_custom_call.1} parent=11 // pred_fallthru
          _
        // Predicated region
        $region29: #{tpu_custom_call.1} parent=11 // pred_check
          %p494 = pneg %p251
        $region30: #{tpu_custom_call.1} parent=11 // pred_check_branch
          %496 = sbr.rel (%p494) target = $region32
        $region31: #{tpu_custom_call.1} parent=11 // pred_region
          %s498 = ssub.s32 16, 16
          %499 = vsyncadd [#allocation12], %s498
          %s501 = sshll.u32 [#allocation11], 4
          %s502 = int_to_ptr.vmem [resolvable:$true] %s501
          %504 = dma.hbm_to_vmem [thread:$0]  %s7, 16, %s502, [#allocation12]
        $region32: #{tpu_custom_call.1} parent=11 // pred_fallthru
          _
        // Predicated region
        $region33: #{tpu_custom_call.1} parent=11 // pred_check
          %p505 = pneg %p272
        $region34: #{tpu_custom_call.1} parent=11 // pred_check_branch
          %507 = sbr.rel (%p505) target = $region36
        $region35: #{tpu_custom_call.1} parent=11 // pred_region
          _
        $region36: #{tpu_custom_call.1} parent=11 // pred_fallthru
          _
        // Predicated region
        $region37: #{tpu_custom_call.1} parent=11 // pred_check
          %p508 = pneg %p293
        $region38: #{tpu_custom_call.1} parent=11 // pred_check_branch
          %510 = sbr.rel (%p508) target = $region40
        $region39: #{tpu_custom_call.1} parent=11 // pred_region
          _
        $region40: #{tpu_custom_call.1} parent=11 // pred_fallthru
          _
        // Predicated region
        $region41: #{tpu_custom_call.1} parent=11 // pred_check
          %p511 = pneg %p314
        $region42: #{tpu_custom_call.1} parent=11 // pred_check_branch
          %513 = sbr.rel (%p511) target = $region44
        $region43: #{tpu_custom_call.1} parent=11 // pred_region
          %s515 = ssub.s32 256, 256
          %516 = vsyncadd [#allocation12], %s515
          %s517 = sshll.u32 [#allocation13], 4
          %s518 = int_to_ptr.vmem [resolvable:$true] %s517
          %523 = dma.hbm_to_vmem [thread:$0]  %s10, 256, %s518, [#allocation12], 128, 128, 8
        $region44: #{tpu_custom_call.1} parent=11 // pred_fallthru
          _
        // Predicated region
        $region45: #{tpu_custom_call.1} parent=11 // pred_check
          %p524 = pneg %p335
        $region46: #{tpu_custom_call.1} parent=11 // pred_check_branch
          %526 = sbr.rel (%p524) target = $region48
        $region47: #{tpu_custom_call.1} parent=11 // pred_region
          _
        $region48: #{tpu_custom_call.1} parent=11 // pred_fallthru
          _
        // Predicated region
        $region49: #{tpu_custom_call.1} parent=11 // pred_check
          %p527 = pneg %p356
        $region50: #{tpu_custom_call.1} parent=11 // pred_check_branch
          %529 = sbr.rel (%p527) target = $region52
        $region51: #{tpu_custom_call.1} parent=11 // pred_region
          %s531 = ssub.s32 1024, 1024
          %532 = vsyncadd [#allocation15], %s531
          %s533 = sshll.u32 [#allocation14], 4
          %s534 = int_to_ptr.vmem [resolvable:$true] %s533
          %539 = dma.hbm_to_vmem [thread:$0]  %s12, 1024, %s534, [#allocation15], 64, 64, 4
        $region52: #{tpu_custom_call.1} parent=11 // pred_fallthru
          _
        // Predicated region
        $region53: #{tpu_custom_call.1} parent=11 // pred_check
          %p540 = pneg %p377
        $region54: #{tpu_custom_call.1} parent=11 // pred_check_branch
          %542 = sbr.rel (%p540) target = $region56
        $region55: #{tpu_custom_call.1} parent=11 // pred_region
          _
        $region56: #{tpu_custom_call.1} parent=11 // pred_fallthru
          _
        // Predicated region
        $region57: #{tpu_custom_call.1} parent=11 // pred_check
          %p543 = pneg %p398
        $region58: #{tpu_custom_call.1} parent=11 // pred_check_branch
          %545 = sbr.rel (%p543) target = $region60
        $region59: #{tpu_custom_call.1} parent=11 // pred_region
          %s547 = ssub.s32 2048, 2048
          %548 = vsyncadd [#allocation15], %s547
          %s549 = sshll.u32 [#allocation16], 4
          %s550 = int_to_ptr.vmem [resolvable:$true] %s549
          %555 = dma.hbm_to_vmem [thread:$0]  %s14, 2048, %s550, [#allocation15], 64, 64, 4
        $region60: #{tpu_custom_call.1} parent=11 // pred_fallthru
          _
        // Predicated region
        $region61: #{tpu_custom_call.1} parent=11 // pred_check
          %p556 = pneg %p419
        $region62: #{tpu_custom_call.1} parent=11 // pred_check_branch
          %558 = sbr.rel (%p556) target = $region64
        $region63: #{tpu_custom_call.1} parent=11 // pred_region
          _
        $region64: #{tpu_custom_call.1} parent=11 // pred_fallthru
          _
      $region12: #{tpu_custom_call.1} parent=5 // pred_fallthru
        _
      %p559 = scmp.lt.s32.totalorder %s34, 4
      // Predicated region
      $region65: #{tpu_custom_call.1} parent=5 // pred_check
        %p560 = pneg %p559
      $region66: #{tpu_custom_call.1} parent=5 // pred_check_branch
        %562 = sbr.rel (%p560) target = $region68
      $region67: #{tpu_custom_call.1} parent=5 // pred_region
        // Predicated region
        $region69: #{tpu_custom_call.1} parent=67 // pred_check
          %p563 = pneg %p76
        $region70: #{tpu_custom_call.1} parent=67 // pred_check_branch
          %565 = sbr.rel (%p563) target = $region72
        $region71: #{tpu_custom_call.1} parent=67 // pred_region
          %s566 = sand.u32 %s66, 1
          %s567 = scalar_lea.sflag [#allocation3], %s566
          %s568 = sand.u32 %s66, 1
          %s569 = smul.addr %s568, 8
          %s570 = scalar_lea.vmem [#allocation2], %s569
          %s571 = smul.u32 %s42, 4
          %s572 = ssub.s32 %s571, 1
          %p573 = scmp.gt.s32.totalorder %s572, 0
          %s574 = scalar_select %p573, %s572, 0
          %s576 = ssub.s32 128, 128
          %577 = vsyncadd %s567, %s576
          %s578 = smul.addr %s41, 8
          %s579 = sadd.s32 %s574, %s578
          %s580 = smul.addr %s579, 128
          %s581 = scalar_lea.hbm %s0, %s580
          %s583 = sshll.u32 %s570, 4
          %s584 = int_to_ptr.vmem [resolvable:$true] %s583
          %586 = dma.hbm_to_vmem [thread:$0]  %s581, 128, %s584, %s567
        $region72: #{tpu_custom_call.1} parent=67 // pred_fallthru
          _
        // Predicated region
        $region73: #{tpu_custom_call.1} parent=67 // pred_check
          %p587 = pneg %p104
        $region74: #{tpu_custom_call.1} parent=67 // pred_check_branch
          %589 = sbr.rel (%p587) target = $region76
        $region75: #{tpu_custom_call.1} parent=67 // pred_region
          %s590 = sand.u32 %s34, 1
          %s591 = scalar_lea.sflag [#allocation6], %s590
          %s592 = sand.u32 %s94, 1
          %s593 = smul.addr %s592, 32
          %s594 = scalar_lea.vmem [#allocation5], %s593
          %s595 = smul.u32 4, %s42
          %s597 = ssub.s32 512, 512
          %598 = vsyncadd %s591, %s597
          %s599 = smul.addr %s41, 8
          %s600 = sadd.s32 %s595, %s599
          %s601 = smul.addr %s600, 128
          %s602 = scalar_lea.hbm %s1, %s601
          %s603 = sshll.u32 %s594, 4
          %s604 = int_to_ptr.vmem [resolvable:$true] %s603
          %609 = dma.hbm_to_vmem [thread:$0]  %s602, 512, %s604, %s591, 128, 128, 8
        $region76: #{tpu_custom_call.1} parent=67 // pred_fallthru
          _
        // Predicated region
        $region77: #{tpu_custom_call.1} parent=67 // pred_check
          %p610 = pneg %p140
        $region78: #{tpu_custom_call.1} parent=67 // pred_check_branch
          %612 = sbr.rel (%p610) target = $region80
        $region79: #{tpu_custom_call.1} parent=67 // pred_region
          %s613 = sand.u32 %s34, 1
          %s614 = scalar_lea.sflag [#allocation6], %s613
          %s615 = sand.u32 %s130, 1
          %s616 = smul.addr %s615, 8
          %s617 = scalar_lea.vmem [#allocation7], %s616
          %s618 = sadd.s32 %s42, 1
          %s619 = smul.u32 %s618, 4
          %p620 = scmp.lt.s32.totalorder %s619, 7
          %s621 = scalar_select %p620, %s619, 7
          %s623 = ssub.s32 128, 128
          %624 = vsyncadd %s614, %s623
          %s625 = smul.addr %s41, 8
          %s626 = sadd.s32 %s621, %s625
          %s627 = smul.addr %s626, 128
          %s628 = scalar_lea.hbm %s2, %s627
          %s630 = sshll.u32 %s617, 4
          %s631 = int_to_ptr.vmem [resolvable:$true] %s630
          %633 = dma.hbm_to_vmem [thread:$0]  %s628, 128, %s631, %s614
        $region80: #{tpu_custom_call.1} parent=67 // pred_fallthru
          _
      $region68: #{tpu_custom_call.1} parent=5 // pred_fallthru
        _
      %p634 = scmp.le.s32.totalorder 1, %s34
      %p635 = scmp.lt.s32.totalorder %s34, 5
      %p636 = pnand %p634, %p635
      %p637 = pneg %p636
      // Predicated region
      $region81: #{tpu_custom_call.1} parent=5 // pred_check
        _
      $region82: #{tpu_custom_call.1} parent=5 // pred_check_branch
        %639 = sbr.rel (%p636) target = $region84
      $region83: #{tpu_custom_call.1} parent=5 // pred_region
        %s640 = ssub.s32 %s34, 1
        %s641 = sand.u32 %s69, 1
        %s642 = scalar_lea.sflag [#allocation3], %s641
        %s643 = sand.u32 %s69, 1
        %s644 = smul.addr %s643, 8
        %s645 = scalar_lea.vmem [#allocation2], %s644
        // Predicated region
        $region85: #{tpu_custom_call.1} parent=83 // pred_check
          %p646 = pneg %p82
        $region86: #{tpu_custom_call.1} parent=83 // pred_check_branch
          %648 = sbr.rel (%p646) target = $region88
        $region87: #{tpu_custom_call.1} parent=83 // pred_region
          %649 = dma.done %s642, 128
        $region88: #{tpu_custom_call.1} parent=83 // pred_fallthru
          _
        %s650 = sand.u32 %s39, 1
        %s651 = scalar_lea.sflag [#allocation6], %s650
        %s652 = sand.u32 %s97, 1
        %s653 = smul.addr %s652, 32
        %s654 = scalar_lea.vmem [#allocation5], %s653
        // Predicated region
        $region89: #{tpu_custom_call.1} parent=83 // pred_check
          %p655 = pneg %p110
        $region90: #{tpu_custom_call.1} parent=83 // pred_check_branch
          %657 = sbr.rel (%p655) target = $region92
        $region91: #{tpu_custom_call.1} parent=83 // pred_region
          %658 = dma.done %s651, 512
        $region92: #{tpu_custom_call.1} parent=83 // pred_fallthru
          _
        %s659 = sand.u32 %s39, 1
        %s660 = scalar_lea.sflag [#allocation6], %s659
        %s661 = sand.u32 %s133, 1
        %s662 = smul.addr %s661, 8
        %s663 = scalar_lea.vmem [#allocation7], %s662
        // Predicated region
        $region93: #{tpu_custom_call.1} parent=83 // pred_check
          %p664 = pneg %p146
        $region94: #{tpu_custom_call.1} parent=83 // pred_check_branch
          %666 = sbr.rel (%p664) target = $region96
        $region95: #{tpu_custom_call.1} parent=83 // pred_region
          %667 = dma.done %s660, 128
        $region96: #{tpu_custom_call.1} parent=83 // pred_fallthru
          _
        // Predicated region
        $region97: #{tpu_custom_call.1} parent=83 // pred_check
          %p668 = pneg %p209
        $region98: #{tpu_custom_call.1} parent=83 // pred_check_branch
          %670 = sbr.rel (%p668) target = $region100
        $region99: #{tpu_custom_call.1} parent=83 // pred_region
          %671 = dma.done [#allocation9], 1024
        $region100: #{tpu_custom_call.1} parent=83 // pred_fallthru
          _
        // Predicated region
        $region101: #{tpu_custom_call.1} parent=83 // pred_check
          %p672 = pneg %p230
        $region102: #{tpu_custom_call.1} parent=83 // pred_check_branch
          %674 = sbr.rel (%p672) target = $region104
        $region103: #{tpu_custom_call.1} parent=83 // pred_region
          %675 = dma.done [#allocation9], 1024
        $region104: #{tpu_custom_call.1} parent=83 // pred_fallthru
          _
        // Predicated region
        $region105: #{tpu_custom_call.1} parent=83 // pred_check
          %p676 = pneg %p251
        $region106: #{tpu_custom_call.1} parent=83 // pred_check_branch
          %678 = sbr.rel (%p676) target = $region108
        $region107: #{tpu_custom_call.1} parent=83 // pred_region
          %679 = dma.done [#allocation12], 16
        $region108: #{tpu_custom_call.1} parent=83 // pred_fallthru
          _
        // Predicated region
        $region109: #{tpu_custom_call.1} parent=83 // pred_check
          %p680 = pneg %p314
        $region110: #{tpu_custom_call.1} parent=83 // pred_check_branch
          %682 = sbr.rel (%p680) target = $region112
        $region111: #{tpu_custom_call.1} parent=83 // pred_region
          %683 = dma.done [#allocation12], 256
        $region112: #{tpu_custom_call.1} parent=83 // pred_fallthru
          _
        // Predicated region
        $region113: #{tpu_custom_call.1} parent=83 // pred_check
          %p684 = pneg %p356
        $region114: #{tpu_custom_call.1} parent=83 // pred_check_branch
          %686 = sbr.rel (%p684) target = $region116
        $region115: #{tpu_custom_call.1} parent=83 // pred_region
          %687 = dma.done [#allocation15], 1024
        $region116: #{tpu_custom_call.1} parent=83 // pred_fallthru
          _
        // Predicated region
        $region117: #{tpu_custom_call.1} parent=83 // pred_check
          %p688 = pneg %p398
        $region118: #{tpu_custom_call.1} parent=83 // pred_check_branch
          %690 = sbr.rel (%p688) target = $region120
        $region119: #{tpu_custom_call.1} parent=83 // pred_region
          %691 = dma.done [#allocation15], 2048
        $region120: #{tpu_custom_call.1} parent=83 // pred_fallthru
          _
        %s692 = sand.u32 %s69, 1
        %s693 = scalar_lea.sflag [#allocation3], %s692
        %s694 = sand.u32 %s69, 1
        %s695 = smul.addr %s694, 8
        %s696 = scalar_lea.vmem [#allocation2], %s695
        %p697 = pneg %p82
        %p698 = pneg %p79
        %s699 = sand.u32 %s39, 1
        %s700 = scalar_lea.sflag [#allocation6], %s699
        %s701 = sand.u32 %s97, 1
        %s702 = smul.addr %s701, 32
        %s703 = scalar_lea.vmem [#allocation5], %s702
        %p704 = pneg %p110
        %p705 = pneg %p107
        %s706 = sand.u32 %s39, 1
        %s707 = scalar_lea.sflag [#allocation6], %s706
        %s708 = sand.u32 %s133, 1
        %s709 = smul.addr %s708, 8
        %s710 = scalar_lea.vmem [#allocation7], %s709
        %p711 = pneg %p146
        %p712 = pneg %p143
        %p713 = pneg %p167
        %p714 = pneg %p164
        %p715 = pneg %p188
        %p716 = pneg %p185
        %p717 = pneg %p209
        %p718 = pneg %p206
        %p719 = pneg %p230
        %p720 = pneg %p227
        %p721 = pneg %p251
        %p722 = pneg %p248
        %p723 = pneg %p272
        %p724 = pneg %p269
        %p725 = pneg %p293
        %p726 = pneg %p290
        %p727 = pneg %p314
        %p728 = pneg %p311
        %p729 = pneg %p335
        %p730 = pneg %p332
        %p731 = pneg %p356
        %p732 = pneg %p353
        %p733 = pneg %p377
        %p734 = pneg %p374
        %p735 = pneg %p398
        %p736 = pneg %p395
        %p737 = pneg %p419
        %p738 = pneg %p416
        %p739 = pneg %p447
        %p740 = pneg %p444
        %s741 = sand.u32 %s434, 1
        %s742 = scalar_lea.sflag [#allocation4], %s741
        %s743 = sand.u32 %s434, 1
        %s744 = smul.addr %s743, 32
        %s745 = scalar_lea.vmem [#allocation17], %s744
        %s746 = smul.u32 %s44, 4
        %s747 = ssub.s32 %s746, 1
        %p748 = scmp.gt.s32.totalorder %s747, 0
        %s749 = scalar_select %p748, %s747, 0
        %s750 = smul.u32 4, %s44
        %s751 = sadd.s32 %s44, 1
        %s752 = smul.u32 %s751, 4
        %p753 = scmp.lt.s32.totalorder %s752, 7
        %s754 = scalar_select %p753, %s752, 7
        %s755 = smul.u32 4, %s44
        %v757 = vld [vmem:[%s645] sm:$0xff]
        %v758 = vld [vmem:[%s654] sm:$0xff]
        %v759 = vld [vmem:[%s654 + $0x8] sm:$0xff]
        %v760 = vld [vmem:[%s654 + $0x10] sm:$0xff]
        %v761 = vld [vmem:[%s654 + $0x18] sm:$0xff]
        %v762 = vld [vmem:[%s663] sm:$0xff]
        %v763 = vld [vmem:[#allocation8] sm:$0xf]
        %v764 = vld [vmem:[#allocation8 + $0x4] sm:$0xf]
        %v765 = vld [vmem:[#allocation8 + $0x8] sm:$0xf]
        %v766 = vld [vmem:[#allocation8 + $0xc] sm:$0xf]
        %v767 = vld [vmem:[#allocation8 + $0x10] sm:$0xf]
        %v768 = vld [vmem:[#allocation8 + $0x14] sm:$0xf]
        %v769 = vld [vmem:[#allocation8 + $0x18] sm:$0xf]
        %v770 = vld [vmem:[#allocation8 + $0x1c] sm:$0xf]
        %v771 = vld [vmem:[#allocation8 + $0x20] sm:$0xf]
        %v772 = vld [vmem:[#allocation8 + $0x24] sm:$0xf]
        %v773 = vld [vmem:[#allocation8 + $0x28] sm:$0xf]
        %v774 = vld [vmem:[#allocation8 + $0x2c] sm:$0xf]
        %v775 = vld [vmem:[#allocation8 + $0x30] sm:$0xf]
        %v776 = vld [vmem:[#allocation8 + $0x34] sm:$0xf]
        %v777 = vld [vmem:[#allocation8 + $0x38] sm:$0xf]
        %v778 = vld [vmem:[#allocation8 + $0x3c] sm:$0xf]
        %v779 = vld [vmem:[#allocation10] sm:$0xf]
        %v780 = vld [vmem:[#allocation10 + $0x4] sm:$0xf]
        %v781 = vld [vmem:[#allocation10 + $0x8] sm:$0xf]
        %v782 = vld [vmem:[#allocation10 + $0xc] sm:$0xf]
        %v783 = vld [vmem:[#allocation10 + $0x10] sm:$0xf]
        %v784 = vld [vmem:[#allocation10 + $0x14] sm:$0xf]
        %v785 = vld [vmem:[#allocation10 + $0x18] sm:$0xf]
        %v786 = vld [vmem:[#allocation10 + $0x1c] sm:$0xf]
        %v787 = vld [vmem:[#allocation10 + $0x20] sm:$0xf]
        %v788 = vld [vmem:[#allocation10 + $0x24] sm:$0xf]
        %v789 = vld [vmem:[#allocation10 + $0x28] sm:$0xf]
        %v790 = vld [vmem:[#allocation10 + $0x2c] sm:$0xf]
        %v791 = vld [vmem:[#allocation10 + $0x30] sm:$0xf]
        %v792 = vld [vmem:[#allocation10 + $0x34] sm:$0xf]
        %v793 = vld [vmem:[#allocation10 + $0x38] sm:$0xf]
        %v794 = vld [vmem:[#allocation10 + $0x3c] sm:$0xf]
        %v795 = vld [vmem:[#allocation11] sm:$0x1]
        %v796 = vld [vmem:[%s8] sm:$0xf]
        %v797 = vld [vmem:[%s8 + $0x4] sm:$0xf]
        %v798 = vld [vmem:[%s8 + $0x8] sm:$0xf]
        %v799 = vld [vmem:[%s8 + $0xc] sm:$0xf]
        %v800 = vld [vmem:[%s8 + $0x10] sm:$0xf]
        %v801 = vld [vmem:[%s8 + $0x14] sm:$0xf]
        %v802 = vld [vmem:[%s8 + $0x18] sm:$0xf]
        %v803 = vld [vmem:[%s8 + $0x1c] sm:$0xf]
        %v804 = vld [vmem:[%s8 + $0x20] sm:$0xf]
        %v805 = vld [vmem:[%s8 + $0x24] sm:$0xf]
        %v806 = vld [vmem:[%s8 + $0x28] sm:$0xf]
        %v807 = vld [vmem:[%s8 + $0x2c] sm:$0xf]
        %v808 = vld [vmem:[%s8 + $0x30] sm:$0xf]
        %v809 = vld [vmem:[%s8 + $0x34] sm:$0xf]
        %v810 = vld [vmem:[%s8 + $0x38] sm:$0xf]
        %v811 = vld [vmem:[%s8 + $0x3c] sm:$0xf]
        %v812 = vld [vmem:[%s8 + $0x40] sm:$0xf]
        %v813 = vld [vmem:[%s8 + $0x44] sm:$0xf]
        %v814 = vld [vmem:[%s8 + $0x48] sm:$0xf]
        %v815 = vld [vmem:[%s8 + $0x4c] sm:$0xf]
        %v816 = vld [vmem:[%s8 + $0x50] sm:$0xf]
        %v817 = vld [vmem:[%s8 + $0x54] sm:$0xf]
        %v818 = vld [vmem:[%s8 + $0x58] sm:$0xf]
        %v819 = vld [vmem:[%s8 + $0x5c] sm:$0xf]
        %v820 = vld [vmem:[%s8 + $0x60] sm:$0xf]
        %v821 = vld [vmem:[%s8 + $0x64] sm:$0xf]
        %v822 = vld [vmem:[%s8 + $0x68] sm:$0xf]
        %v823 = vld [vmem:[%s8 + $0x6c] sm:$0xf]
        %v824 = vld [vmem:[%s8 + $0x70] sm:$0xf]
        %v825 = vld [vmem:[%s8 + $0x74] sm:$0xf]
        %v826 = vld [vmem:[%s8 + $0x78] sm:$0xf]
        %v827 = vld [vmem:[%s8 + $0x7c] sm:$0xf]
        %v828 = vld [vmem:[%s9] sm:$0x1]
        %v829 = vpack.c.bf16 %v758, %v757
        %v830 = vpack.c.bf16 %v760, %v759
        %v831 = vpack.c.bf16 %v762, %v761
        %v832 = vmul.f32 %v757, %v757
        %v833 = vmul.f32 %v758, %v758
        %v834 = vmul.f32 %v759, %v759
        %v835 = vmul.f32 %v760, %v760
        %v836 = vmul.f32 %v761, %v761
        %v837 = vmul.f32 %v762, %v762
        %v838 = vpack.c.bf16 %v833, %v832
        %v839 = vpack.c.bf16 %v835, %v834
        %v840 = vpack.c.bf16 %v837, %v836
        %v857 = vunpack.c.l.b16 %v763
        %v858 = vunpack.c.l.b16 %v764
        %v859 = vunpack.c.l.b16 %v765
        %v860 = vunpack.c.l.b16 %v766
        %v861 = vunpack.c.l.b16 %v767
        %v862 = vunpack.c.l.b16 %v768
        %v863 = vunpack.c.l.b16 %v769
        %v864 = vunpack.c.l.b16 %v770
        %v865 = vunpack.c.l.b16 %v771
        %v866 = vunpack.c.l.b16 %v772
        %v867 = vunpack.c.l.b16 %v773
        %v868 = vunpack.c.l.b16 %v774
        %v869 = vunpack.c.l.b16 %v775
        %v870 = vunpack.c.l.b16 %v776
        %v871 = vunpack.c.l.b16 %v777
        %v872 = vunpack.c.l.b16 %v778
        %v873 = vpack.c.b16 %v858, %v857
        %v874 = vpack.c.b16 %v860, %v859
        %v875 = vpack.c.b16 %v862, %v861
        %v876 = vpack.c.b16 %v864, %v863
        %v877 = vpack.c.b16 %v866, %v865
        %v878 = vpack.c.b16 %v868, %v867
        %v879 = vpack.c.b16 %v870, %v869
        %v880 = vpack.c.b16 %v872, %v871
        %889 = vmatprep.subr.bf16.mxu0 0
        %890 = vmatpush1.bf16.msra.mxu0 %v873
        %891 = vmatprep.subr.bf16.mxu0 0
        %892 = vmatpush1.bf16.msra.mxu0 %v874
        %893 = vmatprep.subr.bf16.mxu0 0
        %894 = vmatpush1.bf16.msra.mxu0 %v875
        %895 = vmatprep.subr.bf16.mxu0 0
        %896 = vmatpush1.bf16.msra.mxu0 %v876
        %897 = vmatprep.subr.bf16.mxu0 0
        %898 = vmatpush1.bf16.msra.mxu0 %v877
        %899 = vmatprep.subr.bf16.mxu0 0
        %900 = vmatpush1.bf16.msra.mxu0 %v878
        %901 = vmatprep.subr.bf16.mxu0 0
        %902 = vmatpush1.bf16.msra.mxu0 %v879
        %903 = vmatprep.subr.bf16.mxu0 0
        %904 = vmatpush1.bf16.msra.mxu0 %v880
        %905 = vmatprep.subr.bf16.mxu0 0
        %906 = vmatpush1.bf16.msra.mxu0 0
        %907 = vmatprep.subr.bf16.mxu0 0
        %908 = vmatpush1.bf16.msra.mxu0 0
        %909 = vmatprep.subr.bf16.mxu0 0
        %910 = vmatpush1.bf16.msra.mxu0 0
        %911 = vmatprep.subr.bf16.mxu0 0
        %912 = vmatpush1.bf16.msra.mxu0 0
        %913 = vmatprep.subr.bf16.mxu0 0
        %914 = vmatpush1.bf16.msra.mxu0 0
        %915 = vmatprep.subr.bf16.mxu0 0
        %916 = vmatpush1.bf16.msra.mxu0 0
        %917 = vmatprep.subr.bf16.mxu0 0
        %918 = vmatpush1.bf16.msra.mxu0 0
        %919 = vmatprep.subr.bf16.mxu0 0
        %920 = vmatpush1.bf16.msra.mxu0 0
        %921 = vmatprep.mubr.bf16.mxu0 0
        %922 = vmatmul.mubr.bf16.gmra.mrb[0].mxu0 %v829
        %v923 = vpop.f32.mrb[0].mxu0
        %v924 = vadd.f32 0.0, %v923
        %v925 = vpop.f32.mrb[0].mxu0
        %v926 = vpop.f32.mrb[0].mxu0
        %v927 = vadd.f32 0.0, %v926
        %v928 = vpop.f32.mrb[0].mxu0
        %929 = vmatprep.mubr.bf16.mxu0 0
        %930 = vmatmul.mubr.bf16.gmra.mrb[0].mxu0 %v830
        %v931 = vpop.f32.mrb[0].mxu0
        %v932 = vadd.f32 0.0, %v931
        %v933 = vpop.f32.mrb[0].mxu0
        %v934 = vpop.f32.mrb[0].mxu0
        %v935 = vadd.f32 0.0, %v934
        %v936 = vpop.f32.mrb[0].mxu0
        %937 = vmatprep.mubr.bf16.mxu0 0
        %938 = vmatmul.mubr.bf16.gmra.mrb[0].mxu0 %v831
        %v939 = vpop.f32.mrb[0].mxu0
        %v940 = vadd.f32 0.0, %v939
        %v941 = vpop.f32.mrb[0].mxu0
        %v942 = vpop.f32.mrb[0].mxu0
        %v943 = vadd.f32 0.0, %v942
        %v944 = vpop.f32.mrb[0].mxu0
        %945 = vdwg.mxu0
        %946 = vmatprep.subr.bf16.mxu0 0
        %947 = vmatpush1.bf16.msra.mxu0 %v873
        %948 = vmatprep.subr.bf16.mxu0 0
        %949 = vmatpush1.bf16.msra.mxu0 %v874
        %950 = vmatprep.subr.bf16.mxu0 0
        %951 = vmatpush1.bf16.msra.mxu0 %v875
        %952 = vmatprep.subr.bf16.mxu0 0
        %953 = vmatpush1.bf16.msra.mxu0 %v876
        %954 = vmatprep.subr.bf16.mxu0 0
        %955 = vmatpush1.bf16.msra.mxu0 %v877
        %956 = vmatprep.subr.bf16.mxu0 0
        %957 = vmatpush1.bf16.msra.mxu0 %v878
        %958 = vmatprep.subr.bf16.mxu0 0
        %959 = vmatpush1.bf16.msra.mxu0 %v879
        %960 = vmatprep.subr.bf16.mxu0 0
        %961 = vmatpush1.bf16.msra.mxu0 %v880
        %962 = vmatprep.subr.bf16.mxu0 0
        %963 = vmatpush1.bf16.msra.mxu0 0
        %964 = vmatprep.subr.bf16.mxu0 0
        %965 = vmatpush1.bf16.msra.mxu0 0
        %966 = vmatprep.subr.bf16.mxu0 0
        %967 = vmatpush1.bf16.msra.mxu0 0
        %968 = vmatprep.subr.bf16.mxu0 0
        %969 = vmatpush1.bf16.msra.mxu0 0
        %970 = vmatprep.subr.bf16.mxu0 0
        %971 = vmatpush1.bf16.msra.mxu0 0
        %972 = vmatprep.subr.bf16.mxu0 0
        %973 = vmatpush1.bf16.msra.mxu0 0
        %974 = vmatprep.subr.bf16.mxu0 0
        %975 = vmatpush1.bf16.msra.mxu0 0
        %976 = vmatprep.subr.bf16.mxu0 0
        %977 = vmatpush1.bf16.msra.mxu0 0
        %978 = vmatprep.mubr.bf16.mxu0 0
        %979 = vmatmul.mubr.bf16.gmra.mrb[0].mxu0 %v838
        %v980 = vpop.f32.mrb[0].mxu0
        %v981 = vadd.f32 0.0, %v980
        %v982 = vpop.f32.mrb[0].mxu0
        %v983 = vpop.f32.mrb[0].mxu0
        %v984 = vadd.f32 0.0, %v983
        %v985 = vpop.f32.mrb[0].mxu0
        %986 = vmatprep.mubr.bf16.mxu0 0
        %987 = vmatmul.mubr.bf16.gmra.mrb[0].mxu0 %v839
        %v988 = vpop.f32.mrb[0].mxu0
        %v989 = vadd.f32 0.0, %v988
        %v990 = vpop.f32.mrb[0].mxu0
        %v991 = vpop.f32.mrb[0].mxu0
        %v992 = vadd.f32 0.0, %v991
        %v993 = vpop.f32.mrb[0].mxu0
        %994 = vmatprep.mubr.bf16.mxu0 0
        %995 = vmatmul.mubr.bf16.gmra.mrb[0].mxu0 %v840
        %v996 = vpop.f32.mrb[0].mxu0
        %v997 = vadd.f32 0.0, %v996
        %v998 = vpop.f32.mrb[0].mxu0
        %v999 = vpop.f32.mrb[0].mxu0
        %v1000 = vadd.f32 0.0, %v999
        %v1001 = vpop.f32.mrb[0].mxu0
        %1002 = vdwg.mxu0
        %v1003 = vmul.f32 %v924, %v924
        %v1004 = vmul.f32 %v927, %v927
        %v1005 = vmul.f32 %v932, %v932
        %v1006 = vmul.f32 %v935, %v935
        %v1007 = vmul.f32 %v940, %v940
        %v1008 = vmul.f32 %v943, %v943
        %v1009 = vsub.f32 %v981, %v1003
        %v1010 = vsub.f32 %v984, %v1004
        %v1011 = vsub.f32 %v989, %v1005
        %v1012 = vsub.f32 %v992, %v1006
        %v1013 = vsub.f32 %v997, %v1007
        %v1014 = vsub.f32 %v1000, %v1008
        %v1015 = vmax.f32 %v1009, 0.0
        %v1016 = vmax.f32 %v1010, 0.0
        %v1017 = vmax.f32 %v1011, 0.0
        %v1018 = vmax.f32 %v1012, 0.0
        %v1019 = vmax.f32 %v1013, 0.0
        %v1020 = vmax.f32 %v1014, 0.0
        %v1021 = vsub.f32 %v757, %v924
        %v1022 = vsub.f32 %v758, %v927
        %v1023 = vsub.f32 %v759, %v932
        %v1024 = vsub.f32 %v760, %v935
        %v1025 = vsub.f32 %v761, %v940
        %v1026 = vsub.f32 %v762, %v943
        %v1027 = vadd.f32 %v1015, 1e-05
        %v1028 = vadd.f32 %v1016, 1e-05
        %v1029 = vadd.f32 %v1017, 1e-05
        %v1030 = vadd.f32 %v1018, 1e-05
        %v1031 = vadd.f32 %v1019, 1e-05
        %v1032 = vadd.f32 %v1020, 1e-05
        %v1033 = vrsqrt.pop %v1027
        %v1034 = vrsqrt.pop %v1028
        %v1035 = vrsqrt.pop %v1029
        %v1036 = vrsqrt.pop %v1030
        %v1037 = vrsqrt.pop %v1031
        %v1038 = vrsqrt.pop %v1032
        %v1039 = vmul.f32 %v1021, %v1033
        %v1040 = vmul.f32 %v1022, %v1034
        %v1041 = vmul.f32 %v1023, %v1035
        %v1042 = vmul.f32 %v1024, %v1036
        %v1043 = vmul.f32 %v1025, %v1037
        %v1044 = vmul.f32 %v1026, %v1038
        %v1045 = vpack.c.bf16 %v1040, %v1039
        %v1046 = vpack.c.bf16 %v1042, %v1041
        %v1047 = vpack.c.bf16 %v1044, %v1043
        %v1049 = vlaneseq
        %v1050 = vshrl.u32 %v1049, 7
        %v1051 = vsub.s32 0, %v1050
        %v1052 = vrot.slane %v795, %v1051
        %v1070 = vunpack.c.l.b16 %v779
        %v1071 = vunpack.c.l.b16 %v780
        %v1072 = vunpack.c.l.b16 %v781
        %v1073 = vunpack.c.l.b16 %v782
        %v1074 = vunpack.c.l.b16 %v783
        %v1075 = vunpack.c.l.b16 %v784
        %v1076 = vunpack.c.l.b16 %v785
        %v1077 = vunpack.c.l.b16 %v786
        %v1078 = vunpack.c.l.b16 %v787
        %v1079 = vunpack.c.l.b16 %v788
        %v1080 = vunpack.c.l.b16 %v789
        %v1081 = vunpack.c.l.b16 %v790
        %v1082 = vunpack.c.l.b16 %v791
        %v1083 = vunpack.c.l.b16 %v792
        %v1084 = vunpack.c.l.b16 %v793
        %v1085 = vunpack.c.l.b16 %v794
        %v1086 = vpack.c.b16 %v1071, %v1070
        %v1087 = vpack.c.b16 %v1073, %v1072
        %v1088 = vpack.c.b16 %v1075, %v1074
        %v1089 = vpack.c.b16 %v1077, %v1076
        %v1090 = vpack.c.b16 %v1079, %v1078
        %v1091 = vpack.c.b16 %v1081, %v1080
        %v1092 = vpack.c.b16 %v1083, %v1082
        %v1093 = vpack.c.b16 %v1085, %v1084
        %1102 = vmatprep.subr.bf16.mxu0 0
        %1103 = vmatpush1.bf16.msra.mxu0 %v1086
        %1104 = vmatprep.subr.bf16.mxu0 0
        %1105 = vmatpush1.bf16.msra.mxu0 %v1087
        %1106 = vmatprep.subr.bf16.mxu0 0
        %1107 = vmatpush1.bf16.msra.mxu0 %v1088
        %1108 = vmatprep.subr.bf16.mxu0 0
        %1109 = vmatpush1.bf16.msra.mxu0 %v1089
        %1110 = vmatprep.subr.bf16.mxu0 0
        %1111 = vmatpush1.bf16.msra.mxu0 %v1090
        %1112 = vmatprep.subr.bf16.mxu0 0
        %1113 = vmatpush1.bf16.msra.mxu0 %v1091
        %1114 = vmatprep.subr.bf16.mxu0 0
        %1115 = vmatpush1.bf16.msra.mxu0 %v1092
        %1116 = vmatprep.subr.bf16.mxu0 0
        %1117 = vmatpush1.bf16.msra.mxu0 %v1093
        %1118 = vmatprep.subr.bf16.mxu0 0
        %1119 = vmatpush1.bf16.msra.mxu0 0
        %1120 = vmatprep.subr.bf16.mxu0 0
        %1121 = vmatpush1.bf16.msra.mxu0 0
        %1122 = vmatprep.subr.bf16.mxu0 0
        %1123 = vmatpush1.bf16.msra.mxu0 0
        %1124 = vmatprep.subr.bf16.mxu0 0
        %1125 = vmatpush1.bf16.msra.mxu0 0
        %1126 = vmatprep.subr.bf16.mxu0 0
        %1127 = vmatpush1.bf16.msra.mxu0 0
        %1128 = vmatprep.subr.bf16.mxu0 0
        %1129 = vmatpush1.bf16.msra.mxu0 0
        %1130 = vmatprep.subr.bf16.mxu0 0
        %1131 = vmatpush1.bf16.msra.mxu0 0
        %1132 = vmatprep.subr.bf16.mxu0 0
        %1133 = vmatpush1.bf16.msra.mxu0 0
        %1134 = vmatprep.mubr.bf16.mxu0 0
        %1135 = vmatmul.mubr.bf16.gmra.mrb[0].mxu0 %v1045
        %v1136 = vpop.f32.mrb[0].mxu0
        %v1137 = vadd.f32 %v1052, %v1136
        %v1138 = vpop.f32.mrb[0].mxu0
        %v1139 = vpop.f32.mrb[0].mxu0
        %v1140 = vadd.f32 %v1052, %v1139
        %v1141 = vpop.f32.mrb[0].mxu0
        %1142 = vmatprep.mubr.bf16.mxu0 0
        %1143 = vmatmul.mubr.bf16.gmra.mrb[0].mxu0 %v1046
        %v1144 = vpop.f32.mrb[0].mxu0
        %v1145 = vadd.f32 %v1052, %v1144
        %v1146 = vpop.f32.mrb[0].mxu0
        %v1147 = vpop.f32.mrb[0].mxu0
        %v1148 = vadd.f32 %v1052, %v1147
        %v1149 = vpop.f32.mrb[0].mxu0
        %1150 = vmatprep.mubr.bf16.mxu0 0
        %1151 = vmatmul.mubr.bf16.gmra.mrb[0].mxu0 %v1047
        %v1152 = vpop.f32.mrb[0].mxu0
        %v1153 = vadd.f32 %v1052, %v1152
        %v1154 = vpop.f32.mrb[0].mxu0
        %v1155 = vpop.f32.mrb[0].mxu0
        %v1156 = vadd.f32 %v1052, %v1155
        %v1157 = vpop.f32.mrb[0].mxu0
        %1158 = vdwg.mxu0
        %v1159 = vxor.u32 %v1137, 2147483648
        %v1160 = vxor.u32 %v1140, 2147483648
        %v1161 = vxor.u32 %v1145, 2147483648
        %v1162 = vxor.u32 %v1148, 2147483648
        %v1163 = vxor.u32 %v1153, 2147483648
        %v1164 = vxor.u32 %v1156, 2147483648
        %v1165 = vmul.f32 %v1159, 1.442695
        %v1166 = vpow.pop %v1165
        %v1167 = vmul.f32 %v1160, 1.442695
        %v1168 = vpow.pop %v1167
        %v1169 = vmul.f32 %v1161, 1.442695
        %v1170 = vpow.pop %v1169
        %v1171 = vmul.f32 %v1162, 1.442695
        %v1172 = vpow.pop %v1171
        %v1173 = vmul.f32 %v1163, 1.442695
        %v1174 = vpow.pop %v1173
        %v1175 = vmul.f32 %v1164, 1.442695
        %v1176 = vpow.pop %v1175
        %v1177 = vadd.f32 %v1166, 1.0
        %v1178 = vadd.f32 %v1168, 1.0
        %v1179 = vadd.f32 %v1170, 1.0
        %v1180 = vadd.f32 %v1172, 1.0
        %v1181 = vadd.f32 %v1174, 1.0
        %v1182 = vadd.f32 %v1176, 1.0
        %v1183 = vrcp.pop %v1177
        %v1184 = vmul.f32 1.0, %v1183
        %v1185 = vrcp.pop %v1178
        %v1186 = vmul.f32 1.0, %v1185
        %v1187 = vrcp.pop %v1179
        %v1188 = vmul.f32 1.0, %v1187
        %v1189 = vrcp.pop %v1180
        %v1190 = vmul.f32 1.0, %v1189
        %v1191 = vrcp.pop %v1181
        %v1192 = vmul.f32 1.0, %v1191
        %v1193 = vrcp.pop %v1182
        %v1194 = vmul.f32 1.0, %v1193
        %v1195 = vmul.f32 %v1137, %v1184
        %v1196 = vmul.f32 %v1140, %v1186
        %v1197 = vmul.f32 %v1145, %v1188
        %v1198 = vmul.f32 %v1148, %v1190
        %v1199 = vmul.f32 %v1153, %v1192
        %v1200 = vmul.f32 %v1156, %v1194
        %v1201 = vpack.c.bf16 %v1196, %v1195
        %v1202 = vpack.c.bf16 %v1198, %v1197
        %v1203 = vpack.c.bf16 %v1200, %v1199
        %v1205 = vlaneseq
        %v1206 = vshrl.u32 %v1205, 7
        %v1207 = vsub.s32 0, %v1206
        %v1208 = vrot.slane %v828, %v1207
        %v1242 = vunpack.c.l.b16 %v796
        %v1243 = vunpack.c.l.b16 %v797
        %v1244 = vunpack.c.l.b16 %v798
        %v1245 = vunpack.c.l.b16 %v799
        %v1246 = vunpack.c.l.b16 %v800
        %v1247 = vunpack.c.l.b16 %v801
        %v1248 = vunpack.c.l.b16 %v802
        %v1249 = vunpack.c.l.b16 %v803
        %v1250 = vunpack.c.l.b16 %v804
        %v1251 = vunpack.c.l.b16 %v805
        %v1252 = vunpack.c.l.b16 %v806
        %v1253 = vunpack.c.l.b16 %v807
        %v1254 = vunpack.c.l.b16 %v808
        %v1255 = vunpack.c.l.b16 %v809
        %v1256 = vunpack.c.l.b16 %v810
        %v1257 = vunpack.c.l.b16 %v811
        %v1258 = vunpack.c.l.b16 %v812
        %v1259 = vunpack.c.l.b16 %v813
        %v1260 = vunpack.c.l.b16 %v814
        %v1261 = vunpack.c.l.b16 %v815
        %v1262 = vunpack.c.l.b16 %v816
        %v1263 = vunpack.c.l.b16 %v817
        %v1264 = vunpack.c.l.b16 %v818
        %v1265 = vunpack.c.l.b16 %v819
        %v1266 = vunpack.c.l.b16 %v820
        %v1267 = vunpack.c.l.b16 %v821
        %v1268 = vunpack.c.l.b16 %v822
        %v1269 = vunpack.c.l.b16 %v823
        %v1270 = vunpack.c.l.b16 %v824
        %v1271 = vunpack.c.l.b16 %v825
        %v1272 = vunpack.c.l.b16 %v826
        %v1273 = vunpack.c.l.b16 %v827
        %v1274 = vpack.c.b16 %v1243, %v1242
        %v1275 = vpack.c.b16 %v1245, %v1244
        %v1276 = vpack.c.b16 %v1247, %v1246
        %v1277 = vpack.c.b16 %v1249, %v1248
        %v1278 = vpack.c.b16 %v1251, %v1250
        %v1279 = vpack.c.b16 %v1253, %v1252
        %v1280 = vpack.c.b16 %v1255, %v1254
        %v1281 = vpack.c.b16 %v1257, %v1256
        %v1282 = vpack.c.b16 %v1259, %v1258
        %v1283 = vpack.c.b16 %v1261, %v1260
        %v1284 = vpack.c.b16 %v1263, %v1262
        %v1285 = vpack.c.b16 %v1265, %v1264
        %v1286 = vpack.c.b16 %v1267, %v1266
        %v1287 = vpack.c.b16 %v1269, %v1268
        %v1288 = vpack.c.b16 %v1271, %v1270
        %v1289 = vpack.c.b16 %v1273, %v1272
        %1306 = vmatprep.subr.bf16.mxu0 0
        %1307 = vmatpush1.bf16.msra.mxu0 %v1274
        %1308 = vmatprep.subr.bf16.mxu0 0
        %1309 = vmatpush1.bf16.msra.mxu0 %v1275
        %1310 = vmatprep.subr.bf16.mxu0 0
        %1311 = vmatpush1.bf16.msra.mxu0 %v1276
        %1312 = vmatprep.subr.bf16.mxu0 0
        %1313 = vmatpush1.bf16.msra.mxu0 %v1277
        %1314 = vmatprep.subr.bf16.mxu0 0
        %1315 = vmatpush1.bf16.msra.mxu0 %v1278
        %1316 = vmatprep.subr.bf16.mxu0 0
        %1317 = vmatpush1.bf16.msra.mxu0 %v1279
        %1318 = vmatprep.subr.bf16.mxu0 0
        %1319 = vmatpush1.bf16.msra.mxu0 %v1280
        %1320 = vmatprep.subr.bf16.mxu0 0
        %1321 = vmatpush1.bf16.msra.mxu0 %v1281
        %1322 = vmatprep.subr.bf16.mxu0 0
        %1323 = vmatpush1.bf16.msra.mxu0 %v1282
        %1324 = vmatprep.subr.bf16.mxu0 0
        %1325 = vmatpush1.bf16.msra.mxu0 %v1283
        %1326 = vmatprep.subr.bf16.mxu0 0
        %1327 = vmatpush1.bf16.msra.mxu0 %v1284
        %1328 = vmatprep.subr.bf16.mxu0 0
        %1329 = vmatpush1.bf16.msra.mxu0 %v1285
        %1330 = vmatprep.subr.bf16.mxu0 0
        %1331 = vmatpush1.bf16.msra.mxu0 %v1286
        %1332 = vmatprep.subr.bf16.mxu0 0
        %1333 = vmatpush1.bf16.msra.mxu0 %v1287
        %1334 = vmatprep.subr.bf16.mxu0 0
        %1335 = vmatpush1.bf16.msra.mxu0 %v1288
        %1336 = vmatprep.subr.bf16.mxu0 0
        %1337 = vmatpush1.bf16.msra.mxu0 %v1289
        %1338 = vmatprep.mubr.bf16.mxu0 %v1201
        %1339 = vmatmul.mubr.bf16.gmra.mrb[0].mxu0 %v1045
        %v1340 = vpop.f32.mrb[0].mxu0
        %v1341 = vadd.f32 %v1208, %v1340
        %v1342 = vpop.f32.mrb[0].mxu0
        %v1343 = vpop.f32.mrb[0].mxu0
        %v1344 = vadd.f32 %v1208, %v1343
        %v1345 = vpop.f32.mrb[0].mxu0
        %1346 = vmatprep.mubr.bf16.mxu0 %v1202
        %1347 = vmatmul.mubr.bf16.gmra.mrb[0].mxu0 %v1046
        %v1348 = vpop.f32.mrb[0].mxu0
        %v1349 = vadd.f32 %v1208, %v1348
        %v1350 = vpop.f32.mrb[0].mxu0
        %v1351 = vpop.f32.mrb[0].mxu0
        %v1352 = vadd.f32 %v1208, %v1351
        %v1353 = vpop.f32.mrb[0].mxu0
        %1354 = vmatprep.mubr.bf16.mxu0 %v1203
        %1355 = vmatmul.mubr.bf16.gmra.mrb[0].mxu0 %v1047
        %v1356 = vpop.f32.mrb[0].mxu0
        %v1357 = vadd.f32 %v1208, %v1356
        %v1358 = vpop.f32.mrb[0].mxu0
        %v1359 = vpop.f32.mrb[0].mxu0
        %v1360 = vadd.f32 %v1208, %v1359
        %v1361 = vpop.f32.mrb[0].mxu0
        %1362 = vdwg.mxu0
        %v1363 = vadd.f32 %v1341, %v757
        %v1364 = vadd.f32 %v1344, %v758
        %v1365 = vadd.f32 %v1349, %v759
        %v1366 = vadd.f32 %v1352, %v760
        %v1367 = vadd.f32 %v1357, %v761
        %v1368 = vadd.f32 %v1360, %v762
        %v1369 = vlaneseq
        %v1370 = vshrl.u32 %v1369, 7
        %v1371 = vadd.s32 %v1370, 8
        %v1372 = vadd.s32 %v1370, 16
        %v1373 = vadd.s32 %v1370, 24
        %v1374 = vadd.s32 %v1370, 32
        %v1375 = vadd.s32 %v1370, 40
        %s1376 = smul.u32 %s44, 32
        %s1377 = ssub.s32 %s1376, 8
        %v1378 = vstv %s1377
        %v1379 = vadd.s32 %v1378, %v1370
        %v1380 = vadd.s32 %v1378, %v1371
        %v1381 = vadd.s32 %v1378, %v1372
        %v1382 = vadd.s32 %v1378, %v1373
        %v1383 = vadd.s32 %v1378, %v1374
        %v1384 = vadd.s32 %v1378, %v1375
        %vm1385 = vcmp.ge.s32.totalorder %v1379, 0
        %vm1386 = vcmp.ge.s32.totalorder %v1380, 0
        %vm1387 = vcmp.ge.s32.totalorder %v1381, 0
        %vm1388 = vcmp.ge.s32.totalorder %v1382, 0
        %vm1389 = vcmp.ge.s32.totalorder %v1383, 0
        %vm1390 = vcmp.ge.s32.totalorder %v1384, 0
        %vm1391 = vcmp.lt.s32.totalorder %v1379, 64
        %vm1392 = vcmp.lt.s32.totalorder %v1380, 64
        %vm1393 = vcmp.lt.s32.totalorder %v1381, 64
        %vm1394 = vcmp.lt.s32.totalorder %v1382, 64
        %vm1395 = vcmp.lt.s32.totalorder %v1383, 64
        %vm1396 = vcmp.lt.s32.totalorder %v1384, 64
        %vm1397 = vmand %vm1385, %vm1391
        %vm1398 = vmand %vm1386, %vm1392
        %vm1399 = vmand %vm1387, %vm1393
        %vm1400 = vmand %vm1388, %vm1394
        %vm1401 = vmand %vm1389, %vm1395
        %vm1402 = vmand %vm1390, %vm1396
        %v1403 = vsel %vm1397, %v1363, 0.0
        %v1404 = vsel %vm1398, %v1364, 0.0
        %v1405 = vsel %vm1399, %v1365, 0.0
        %v1406 = vsel %vm1400, %v1366, 0.0
        %v1407 = vsel %vm1401, %v1367, 0.0
        %v1408 = vsel %vm1402, %v1368, 0.0
        %v1409 = vld [vmem:[#allocation13] sm:$0xff]
        %v1410 = vld [vmem:[#allocation13 + $0x8] sm:$0x1]
        %v1411 = vld [vmem:[%s3] sm:$0xff]
        %v1412 = vld [vmem:[%s3 + $0x8] sm:$0xff]
        %v1413 = vld [vmem:[%s3 + $0x10] sm:$0xff]
        %v1414 = vld [vmem:[%s3 + $0x18] sm:$0xff]
        %v1415 = vld [vmem:[%s3 + $0x20] sm:$0xff]
        %v1416 = vld [vmem:[%s3 + $0x28] sm:$0xff]
        %v1417 = vld [vmem:[%s4] sm:$0xff]
        %v1418 = vld [vmem:[%s4 + $0x8] sm:$0xff]
        %v1419 = vld [vmem:[%s4 + $0x10] sm:$0xff]
        %v1420 = vld [vmem:[%s4 + $0x18] sm:$0xff]
        %v1421 = vld [vmem:[%s4 + $0x20] sm:$0xff]
        %v1422 = vld [vmem:[%s4 + $0x28] sm:$0xff]
        %vm1429 = vcmask 1040384
        %v1430 = vrot.slane %v1403, 7
        %v1431 = vrot.slane %v1404, 7
        %v1432 = vsel %vm1429, %v1430, %v1431
        %v1433 = vrot.slane %v1405, 7
        %v1434 = vsel %vm1429, %v1431, %v1433
        %v1435 = vrot.slane %v1406, 7
        %v1436 = vsel %vm1429, %v1433, %v1435
        %v1437 = vrot.slane %v1407, 7
        %v1438 = vsel %vm1429, %v1435, %v1437
        %v1439 = vrot.slane %v1408, 7
        %v1440 = vsel %vm1429, %v1437, %v1439
        %1441 = vrot.lane.b32.xlu0 %v1430, 32
        %v1442 = vpop.permute.xlu0 %1441
        %1443 = vrot.lane.b32.xlu0 %v1432, 32
        %v1444 = vpop.permute.xlu0 %1443
        %1445 = vrot.lane.b32.xlu0 %v1434, 32
        %v1446 = vpop.permute.xlu0 %1445
        %1447 = vrot.lane.b32.xlu0 %v1436, 32
        %v1448 = vpop.permute.xlu0 %1447
        %1449 = vrot.lane.b32.xlu0 %v1438, 32
        %v1450 = vpop.permute.xlu0 %1449
        %1451 = vrot.lane.b32.xlu0 %v1440, 32
        %v1452 = vpop.permute.xlu0 %1451
        %v1459 = vsel %vm1429, 0.0, %v1442
        %1461 = vset.pattern.permute.xlu0 0
        %1462 = vperm.xlu0 %1461, %v1411
        %v1463 = vpop.permute.xlu0 %1462
        %1466 = vset.pattern.permute.xlu0 0
        %1467 = vperm.xlu0 %1466, %v1412
        %v1468 = vpop.permute.xlu0 %1467
        %1471 = vset.pattern.permute.xlu0 0
        %1472 = vperm.xlu0 %1471, %v1413
        %v1473 = vpop.permute.xlu0 %1472
        %1476 = vset.pattern.permute.xlu0 0
        %1477 = vperm.xlu0 %1476, %v1414
        %v1478 = vpop.permute.xlu0 %1477
        %1481 = vset.pattern.permute.xlu0 0
        %1482 = vperm.xlu0 %1481, %v1415
        %v1483 = vpop.permute.xlu0 %1482
        %1486 = vset.pattern.permute.xlu0 0
        %1487 = vperm.xlu0 %1486, %v1416
        %v1488 = vpop.permute.xlu0 %1487
        %v1490 = vmul.f32 %v1459, %v1463
        %v1491 = vmul.f32 %v1444, %v1468
        %v1492 = vmul.f32 %v1446, %v1473
        %v1493 = vmul.f32 %v1448, %v1478
        %v1494 = vmul.f32 %v1450, %v1483
        %v1495 = vmul.f32 %v1452, %v1488
        %1496 = vrot.lane.b32.xlu0 %v1403, 32
        %v1497 = vpop.permute.xlu0 %1496
        %1498 = vrot.lane.b32.xlu0 %v1404, 32
        %v1499 = vpop.permute.xlu0 %1498
        %1500 = vrot.lane.b32.xlu0 %v1405, 32
        %v1501 = vpop.permute.xlu0 %1500
        %1502 = vrot.lane.b32.xlu0 %v1406, 32
        %v1503 = vpop.permute.xlu0 %1502
        %1504 = vrot.lane.b32.xlu0 %v1407, 32
        %v1505 = vpop.permute.xlu0 %1504
        %1506 = vrot.lane.b32.xlu0 %v1408, 32
        %v1507 = vpop.permute.xlu0 %1506
        %vm1514 = vcmask 261120
        %v1515 = vsel %vm1514, %v1490, %v1497
        %v1516 = vsel %vm1514, %v1491, %v1499
        %v1517 = vsel %vm1514, %v1492, %v1501
        %v1518 = vsel %vm1514, %v1493, %v1503
        %v1519 = vsel %vm1514, %v1494, %v1505
        %v1520 = vsel %vm1514, %v1495, %v1507
        %v1521 = vlaneseq
        %v1522 = vshrl.u32 %v1521, 7
        %v1523 = vsub.s32 0, %v1522
        %v1524 = vrot.slane %v1409, %v1523
        %v1525 = vmul.f32 %v1515, %v1524
        %v1526 = vmul.f32 %v1516, %v1524
        %v1527 = vmul.f32 %v1517, %v1524
        %v1528 = vmul.f32 %v1518, %v1524
        %v1529 = vmul.f32 %v1519, %v1524
        %v1530 = vadd.f32 %v1525, 0.0
        %v1531 = vadd.f32 %v1526, 0.0
        %v1532 = vadd.f32 %v1527, 0.0
        %v1533 = vadd.f32 %v1528, 0.0
        %v1534 = vadd.f32 %v1529, 0.0
        %v1535 = vlaneseq
        %v1536 = vshrl.u32 %v1535, 7
        %v1537 = vsub.s32 3, %v1536
        %v1538 = vrot.slane %v1409, %v1537
        %v1539 = vmul.f32 %v1516, %v1538
        %v1540 = vmul.f32 %v1517, %v1538
        %v1541 = vmul.f32 %v1518, %v1538
        %v1542 = vmul.f32 %v1519, %v1538
        %vm1547 = vcmask 1043456
        %v1548 = vrot.slane %v1539, 4
        %v1549 = vrot.slane %v1540, 4
        %v1550 = vsel %vm1547, %v1548, %v1549
        %v1551 = vrot.slane %v1541, 4
        %v1552 = vsel %vm1547, %v1549, %v1551
        %v1553 = vrot.slane %v1542, 4
        %v1554 = vsel %vm1547, %v1551, %v1553
        %v1560 = vadd.f32 %v1530, %v1548
        %v1561 = vadd.f32 %v1531, %v1550
        %v1562 = vadd.f32 %v1532, %v1552
        %v1563 = vadd.f32 %v1533, %v1554
        %v1564 = vadd.f32 %v1534, %v1553
        %v1565 = vlaneseq
        %v1566 = vshrl.u32 %v1565, 7
        %v1567 = vsub.s32 6, %v1566
        %v1568 = vrot.slane %v1409, %v1567
        %v1569 = vmul.f32 %v1516, %v1568
        %v1570 = vmul.f32 %v1517, %v1568
        %v1571 = vmul.f32 %v1518, %v1568
        %v1572 = vmul.f32 %v1519, %v1568
        %v1573 = vmul.f32 %v1520, %v1568
        %v1574 = vadd.f32 %v1560, %v1569
        %v1575 = vadd.f32 %v1561, %v1570
        %v1576 = vadd.f32 %v1562, %v1571
        %v1577 = vadd.f32 %v1563, %v1572
        %v1578 = vadd.f32 %v1564, %v1573
        %v1579 = vlaneseq
        %v1580 = vshrl.u32 %v1579, 7
        %v1581 = vsub.s32 1, %v1580
        %v1582 = vrot.slane %v1409, %v1581
        %v1583 = vmul.f32 %v1403, %v1582
        %v1584 = vmul.f32 %v1404, %v1582
        %v1585 = vmul.f32 %v1405, %v1582
        %v1586 = vmul.f32 %v1406, %v1582
        %v1587 = vmul.f32 %v1407, %v1582
        %v1588 = vadd.f32 %v1574, %v1583
        %v1589 = vadd.f32 %v1575, %v1584
        %v1590 = vadd.f32 %v1576, %v1585
        %v1591 = vadd.f32 %v1577, %v1586
        %v1592 = vadd.f32 %v1578, %v1587
        %v1593 = vlaneseq
        %v1594 = vshrl.u32 %v1593, 7
        %v1595 = vsub.s32 4, %v1594
        %v1596 = vrot.slane %v1409, %v1595
        %v1597 = vmul.f32 %v1404, %v1596
        %v1598 = vmul.f32 %v1405, %v1596
        %v1599 = vmul.f32 %v1406, %v1596
        %v1600 = vmul.f32 %v1407, %v1596
        %v1605 = vrot.slane %v1597, 4
        %v1606 = vrot.slane %v1598, 4
        %v1607 = vsel %vm1547, %v1605, %v1606
        %v1608 = vrot.slane %v1599, 4
        %v1609 = vsel %vm1547, %v1606, %v1608
        %v1610 = vrot.slane %v1600, 4
        %v1611 = vsel %vm1547, %v1608, %v1610
        %v1617 = vadd.f32 %v1588, %v1605
        %v1618 = vadd.f32 %v1589, %v1607
        %v1619 = vadd.f32 %v1590, %v1609
        %v1620 = vadd.f32 %v1591, %v1611
        %v1621 = vadd.f32 %v1592, %v1610
        %v1622 = vlaneseq
        %v1623 = vshrl.u32 %v1622, 7
        %v1624 = vsub.s32 7, %v1623
        %v1625 = vrot.slane %v1409, %v1624
        %v1626 = vmul.f32 %v1404, %v1625
        %v1627 = vmul.f32 %v1405, %v1625
        %v1628 = vmul.f32 %v1406, %v1625
        %v1629 = vmul.f32 %v1407, %v1625
        %v1630 = vmul.f32 %v1408, %v1625
        %v1631 = vadd.f32 %v1617, %v1626
        %v1632 = vadd.f32 %v1618, %v1627
        %v1633 = vadd.f32 %v1619, %v1628
        %v1634 = vadd.f32 %v1620, %v1629
        %v1635 = vadd.f32 %v1621, %v1630
        %vm1636 = vcmask 1046528
        %v1637 = vrot.slane %v1403, 1
        %v1638 = vrot.slane %v1404, 1
        %v1639 = vsel %vm1636, %v1637, %v1638
        %v1640 = vrot.slane %v1405, 1
        %v1641 = vsel %vm1636, %v1638, %v1640
        %v1642 = vrot.slane %v1406, 1
        %v1643 = vsel %vm1636, %v1640, %v1642
        %v1644 = vrot.slane %v1407, 1
        %v1645 = vsel %vm1636, %v1642, %v1644
        %v1646 = vrot.slane %v1408, 1
        %v1647 = vsel %vm1636, %v1644, %v1646
        %v1654 = vsel %vm1636, %v1646, 0.0
        %1656 = vset.pattern.permute.xlu0 0
        %1657 = vperm.xlu0 %1656, %v1417
        %v1658 = vpop.permute.xlu0 %1657
        %1661 = vset.pattern.permute.xlu0 0
        %1662 = vperm.xlu0 %1661, %v1418
        %v1663 = vpop.permute.xlu0 %1662
        %1666 = vset.pattern.permute.xlu0 0
        %1667 = vperm.xlu0 %1666, %v1419
        %v1668 = vpop.permute.xlu0 %1667
        %1671 = vset.pattern.permute.xlu0 0
        %1672 = vperm.xlu0 %1671, %v1420
        %v1673 = vpop.permute.xlu0 %1672
        %1676 = vset.pattern.permute.xlu0 0
        %1677 = vperm.xlu0 %1676, %v1421
        %v1678 = vpop.permute.xlu0 %1677
        %1681 = vset.pattern.permute.xlu0 0
        %1682 = vperm.xlu0 %1681, %v1422
        %v1683 = vpop.permute.xlu0 %1682
        %v1685 = vmul.f32 %v1639, %v1658
        %v1686 = vmul.f32 %v1641, %v1663
        %v1687 = vmul.f32 %v1643, %v1668
        %v1688 = vmul.f32 %v1645, %v1673
        %v1689 = vmul.f32 %v1647, %v1678
        %v1690 = vmul.f32 %v1654, %v1683
        %1691 = vrot.lane.b32.xlu0 %v1403, 96
        %v1692 = vpop.permute.xlu0 %1691
        %1693 = vrot.lane.b32.xlu0 %v1404, 96
        %v1694 = vpop.permute.xlu0 %1693
        %1695 = vrot.lane.b32.xlu0 %v1405, 96
        %v1696 = vpop.permute.xlu0 %1695
        %1697 = vrot.lane.b32.xlu0 %v1406, 96
        %v1698 = vpop.permute.xlu0 %1697
        %1699 = vrot.lane.b32.xlu0 %v1407, 96
        %v1700 = vpop.permute.xlu0 %1699
        %1701 = vrot.lane.b32.xlu0 %v1408, 96
        %v1702 = vpop.permute.xlu0 %1701
        %1715 = vrot.lane.b32.xlu0 %v1685, 96
        %v1716 = vpop.permute.xlu0 %1715
        %1717 = vrot.lane.b32.xlu0 %v1686, 96
        %v1718 = vpop.permute.xlu0 %1717
        %1719 = vrot.lane.b32.xlu0 %v1687, 96
        %v1720 = vpop.permute.xlu0 %1719
        %1721 = vrot.lane.b32.xlu0 %v1688, 96
        %v1722 = vpop.permute.xlu0 %1721
        %1723 = vrot.lane.b32.xlu0 %v1689, 96
        %v1724 = vpop.permute.xlu0 %1723
        %1725 = vrot.lane.b32.xlu0 %v1690, 96
        %v1726 = vpop.permute.xlu0 %1725
        %vm1733 = vcmask 785408
        %v1734 = vsel %vm1733, %v1692, %v1716
        %v1735 = vsel %vm1733, %v1694, %v1718
        %v1736 = vsel %vm1733, %v1696, %v1720
        %v1737 = vsel %vm1733, %v1698, %v1722
        %v1738 = vsel %vm1733, %v1700, %v1724
        %v1739 = vsel %vm1733, %v1702, %v1726
        %v1740 = vlaneseq
        %v1741 = vshrl.u32 %v1740, 7
        %v1742 = vsub.s32 2, %v1741
        %v1743 = vrot.slane %v1409, %v1742
        %v1744 = vmul.f32 %v1734, %v1743
        %v1745 = vmul.f32 %v1735, %v1743
        %v1746 = vmul.f32 %v1736, %v1743
        %v1747 = vmul.f32 %v1737, %v1743
        %v1748 = vmul.f32 %v1738, %v1743
        %v1749 = vadd.f32 %v1631, %v1744
        %v1750 = vadd.f32 %v1632, %v1745
        %v1751 = vadd.f32 %v1633, %v1746
        %v1752 = vadd.f32 %v1634, %v1747
        %v1753 = vadd.f32 %v1635, %v1748
        %v1754 = vlaneseq
        %v1755 = vshrl.u32 %v1754, 7
        %v1756 = vsub.s32 5, %v1755
        %v1757 = vrot.slane %v1409, %v1756
        %v1758 = vmul.f32 %v1735, %v1757
        %v1759 = vmul.f32 %v1736, %v1757
        %v1760 = vmul.f32 %v1737, %v1757
        %v1761 = vmul.f32 %v1738, %v1757
        %v1766 = vrot.slane %v1758, 4
        %v1767 = vrot.slane %v1759, 4
        %v1768 = vsel %vm1547, %v1766, %v1767
        %v1769 = vrot.slane %v1760, 4
        %v1770 = vsel %vm1547, %v1767, %v1769
        %v1771 = vrot.slane %v1761, 4
        %v1772 = vsel %vm1547, %v1769, %v1771
        %v1778 = vadd.f32 %v1749, %v1766
        %v1779 = vadd.f32 %v1750, %v1768
        %v1780 = vadd.f32 %v1751, %v1770
        %v1781 = vadd.f32 %v1752, %v1772
        %v1782 = vadd.f32 %v1753, %v1771
        %v1783 = vlaneseq
        %v1784 = vshrl.u32 %v1783, 7
        %v1785 = vsub.s32 0, %v1784
        %v1786 = vrot.slane %v1410, %v1785
        %v1787 = vmul.f32 %v1735, %v1786
        %v1788 = vmul.f32 %v1736, %v1786
        %v1789 = vmul.f32 %v1737, %v1786
        %v1790 = vmul.f32 %v1738, %v1786
        %v1791 = vmul.f32 %v1739, %v1786
        %v1792 = vadd.f32 %v1778, %v1787
        %v1793 = vadd.f32 %v1779, %v1788
        %v1794 = vadd.f32 %v1780, %v1789
        %v1795 = vadd.f32 %v1781, %v1790
        %v1796 = vadd.f32 %v1782, %v1791
        %v1797 = vld [vmem:[%s11] sm:$0x1]
        %v1799 = vlaneseq
        %v1800 = vshrl.u32 %v1799, 7
        %v1801 = vsub.s32 0, %v1800
        %v1802 = vrot.slane %v1797, %v1801
        %v1804 = vadd.f32 %v1792, %v1802
        %v1805 = vadd.f32 %v1793, %v1802
        %v1806 = vadd.f32 %v1794, %v1802
        %v1807 = vadd.f32 %v1795, %v1802
        %v1808 = vadd.f32 %v1796, %v1802
        %v1809 = vld [vmem:[#allocation14] sm:$0xf]
        %v1810 = vld [vmem:[#allocation14 + $0x4] sm:$0xf]
        %v1811 = vld [vmem:[#allocation14 + $0x8] sm:$0xf]
        %v1812 = vld [vmem:[#allocation14 + $0xc] sm:$0xf]
        %v1813 = vld [vmem:[#allocation14 + $0x10] sm:$0xf]
        %v1814 = vld [vmem:[#allocation14 + $0x14] sm:$0xf]
        %v1815 = vld [vmem:[#allocation14 + $0x18] sm:$0xf]
        %v1816 = vld [vmem:[#allocation14 + $0x1c] sm:$0xf]
        %v1817 = vld [vmem:[#allocation14 + $0x20] sm:$0xf]
        %v1818 = vld [vmem:[#allocation14 + $0x24] sm:$0xf]
        %v1819 = vld [vmem:[#allocation14 + $0x28] sm:$0xf]
        %v1820 = vld [vmem:[#allocation14 + $0x2c] sm:$0xf]
        %v1821 = vld [vmem:[#allocation14 + $0x30] sm:$0xf]
        %v1822 = vld [vmem:[#allocation14 + $0x34] sm:$0xf]
        %v1823 = vld [vmem:[#allocation14 + $0x38] sm:$0xf]
        %v1824 = vld [vmem:[#allocation14 + $0x3c] sm:$0xf]
        %v1825 = vld [vmem:[%s13] sm:$0x1]
        %v1826 = vld [vmem:[#allocation16] sm:$0xf]
        %v1827 = vld [vmem:[#allocation16 + $0x4] sm:$0xf]
        %v1828 = vld [vmem:[#allocation16 + $0x8] sm:$0xf]
        %v1829 = vld [vmem:[#allocation16 + $0xc] sm:$0xf]
        %v1830 = vld [vmem:[#allocation16 + $0x10] sm:$0xf]
        %v1831 = vld [vmem:[#allocation16 + $0x14] sm:$0xf]
        %v1832 = vld [vmem:[#allocation16 + $0x18] sm:$0xf]
        %v1833 = vld [vmem:[#allocation16 + $0x1c] sm:$0xf]
        %v1834 = vld [vmem:[#allocation16 + $0x20] sm:$0xf]
        %v1835 = vld [vmem:[#allocation16 + $0x24] sm:$0xf]
        %v1836 = vld [vmem:[#allocation16 + $0x28] sm:$0xf]
        %v1837 = vld [vmem:[#allocation16 + $0x2c] sm:$0xf]
        %v1838 = vld [vmem:[#allocation16 + $0x30] sm:$0xf]
        %v1839 = vld [vmem:[#allocation16 + $0x34] sm:$0xf]
        %v1840 = vld [vmem:[#allocation16 + $0x38] sm:$0xf]
        %v1841 = vld [vmem:[#allocation16 + $0x3c] sm:$0xf]
        %v1842 = vld [vmem:[#allocation16 + $0x40] sm:$0xf]
        %v1843 = vld [vmem:[#allocation16 + $0x44] sm:$0xf]
        %v1844 = vld [vmem:[#allocation16 + $0x48] sm:$0xf]
        %v1845 = vld [vmem:[#allocation16 + $0x4c] sm:$0xf]
        %v1846 = vld [vmem:[#allocation16 + $0x50] sm:$0xf]
        %v1847 = vld [vmem:[#allocation16 + $0x54] sm:$0xf]
        %v1848 = vld [vmem:[#allocation16 + $0x58] sm:$0xf]
        %v1849 = vld [vmem:[#allocation16 + $0x5c] sm:$0xf]
        %v1850 = vld [vmem:[#allocation16 + $0x60] sm:$0xf]
        %v1851 = vld [vmem:[#allocation16 + $0x64] sm:$0xf]
        %v1852 = vld [vmem:[#allocation16 + $0x68] sm:$0xf]
        %v1853 = vld [vmem:[#allocation16 + $0x6c] sm:$0xf]
        %v1854 = vld [vmem:[#allocation16 + $0x70] sm:$0xf]
        %v1855 = vld [vmem:[#allocation16 + $0x74] sm:$0xf]
        %v1856 = vld [vmem:[#allocation16 + $0x78] sm:$0xf]
        %v1857 = vld [vmem:[#allocation16 + $0x7c] sm:$0xf]
        %v1858 = vld [vmem:[%s15] sm:$0x1]
        %v1859 = vpack.c.bf16 %v1805, %v1804
        %v1860 = vpack.c.bf16 %v1807, %v1806
        %v1861 = vpack.c.bf16 %v1808, %v1808
        %v1862 = vmul.f32 %v1804, %v1804
        %v1863 = vmul.f32 %v1805, %v1805
        %v1864 = vmul.f32 %v1806, %v1806
        %v1865 = vmul.f32 %v1807, %v1807
        %v1866 = vmul.f32 %v1808, %v1808
        %v1867 = vpack.c.bf16 %v1863, %v1862
        %v1868 = vpack.c.bf16 %v1865, %v1864
        %v1869 = vpack.c.bf16 %v1866, %v1866
        %vm1873 = vcmask 1045504
        %v1874 = vrot.slane %v1859, 2
        %v1875 = vrot.slane %v1860, 2
        %v1876 = vsel %vm1873, %v1874, %v1875
        %v1877 = vrot.slane %v1861, 2
        %v1878 = vsel %vm1873, %v1875, %v1877
        %1881 = vmatprep.subr.bf16.mxu0 0
        %1882 = vmatpush1.bf16.msra.mxu0 %v873
        %1883 = vmatprep.subr.bf16.mxu0 0
        %1884 = vmatpush1.bf16.msra.mxu0 %v874
        %1885 = vmatprep.subr.bf16.mxu0 0
        %1886 = vmatpush1.bf16.msra.mxu0 %v875
        %1887 = vmatprep.subr.bf16.mxu0 0
        %1888 = vmatpush1.bf16.msra.mxu0 %v876
        %1889 = vmatprep.subr.bf16.mxu0 0
        %1890 = vmatpush1.bf16.msra.mxu0 %v877
        %1891 = vmatprep.subr.bf16.mxu0 0
        %1892 = vmatpush1.bf16.msra.mxu0 %v878
        %1893 = vmatprep.subr.bf16.mxu0 0
        %1894 = vmatpush1.bf16.msra.mxu0 %v879
        %1895 = vmatprep.subr.bf16.mxu0 0
        %1896 = vmatpush1.bf16.msra.mxu0 %v880
        %1897 = vmatprep.subr.bf16.mxu0 0
        %1898 = vmatpush1.bf16.msra.mxu0 0
        %1899 = vmatprep.subr.bf16.mxu0 0
        %1900 = vmatpush1.bf16.msra.mxu0 0
        %1901 = vmatprep.subr.bf16.mxu0 0
        %1902 = vmatpush1.bf16.msra.mxu0 0
        %1903 = vmatprep.subr.bf16.mxu0 0
        %1904 = vmatpush1.bf16.msra.mxu0 0
        %1905 = vmatprep.subr.bf16.mxu0 0
        %1906 = vmatpush1.bf16.msra.mxu0 0
        %1907 = vmatprep.subr.bf16.mxu0 0
        %1908 = vmatpush1.bf16.msra.mxu0 0
        %1909 = vmatprep.subr.bf16.mxu0 0
        %1910 = vmatpush1.bf16.msra.mxu0 0
        %1911 = vmatprep.subr.bf16.mxu0 0
        %1912 = vmatpush1.bf16.msra.mxu0 0
        %1913 = vmatprep.mubr.bf16.mxu0 0
        %1914 = vmatmul.mubr.bf16.gmra.mrb[0].mxu0 %v1876
        %v1915 = vpop.f32.mrb[0].mxu0
        %v1916 = vadd.f32 0.0, %v1915
        %v1917 = vpop.f32.mrb[0].mxu0
        %v1918 = vpop.f32.mrb[0].mxu0
        %v1919 = vadd.f32 0.0, %v1918
        %v1920 = vpop.f32.mrb[0].mxu0
        %1921 = vmatprep.mubr.bf16.mxu0 0
        %1922 = vmatmul.mubr.bf16.gmra.mrb[0].mxu0 %v1878
        %v1923 = vpop.f32.mrb[0].mxu0
        %v1924 = vadd.f32 0.0, %v1923
        %v1925 = vpop.f32.mrb[0].mxu0
        %v1926 = vpop.f32.mrb[0].mxu0
        %v1927 = vadd.f32 0.0, %v1926
        %v1928 = vpop.f32.mrb[0].mxu0
        %1929 = vdwg.mxu0
        %v1933 = vrot.slane %v1867, 2
        %v1934 = vrot.slane %v1868, 2
        %v1935 = vsel %vm1873, %v1933, %v1934
        %v1936 = vrot.slane %v1869, 2
        %v1937 = vsel %vm1873, %v1934, %v1936
        %1940 = vmatprep.subr.bf16.mxu0 0
        %1941 = vmatpush1.bf16.msra.mxu0 %v873
        %1942 = vmatprep.subr.bf16.mxu0 0
        %1943 = vmatpush1.bf16.msra.mxu0 %v874
        %1944 = vmatprep.subr.bf16.mxu0 0
        %1945 = vmatpush1.bf16.msra.mxu0 %v875
        %1946 = vmatprep.subr.bf16.mxu0 0
        %1947 = vmatpush1.bf16.msra.mxu0 %v876
        %1948 = vmatprep.subr.bf16.mxu0 0
        %1949 = vmatpush1.bf16.msra.mxu0 %v877
        %1950 = vmatprep.subr.bf16.mxu0 0
        %1951 = vmatpush1.bf16.msra.mxu0 %v878
        %1952 = vmatprep.subr.bf16.mxu0 0
        %1953 = vmatpush1.bf16.msra.mxu0 %v879
        %1954 = vmatprep.subr.bf16.mxu0 0
        %1955 = vmatpush1.bf16.msra.mxu0 %v880
        %1956 = vmatprep.subr.bf16.mxu0 0
        %1957 = vmatpush1.bf16.msra.mxu0 0
        %1958 = vmatprep.subr.bf16.mxu0 0
        %1959 = vmatpush1.bf16.msra.mxu0 0
        %1960 = vmatprep.subr.bf16.mxu0 0
        %1961 = vmatpush1.bf16.msra.mxu0 0
        %1962 = vmatprep.subr.bf16.mxu0 0
        %1963 = vmatpush1.bf16.msra.mxu0 0
        %1964 = vmatprep.subr.bf16.mxu0 0
        %1965 = vmatpush1.bf16.msra.mxu0 0
        %1966 = vmatprep.subr.bf16.mxu0 0
        %1967 = vmatpush1.bf16.msra.mxu0 0
        %1968 = vmatprep.subr.bf16.mxu0 0
        %1969 = vmatpush1.bf16.msra.mxu0 0
        %1970 = vmatprep.subr.bf16.mxu0 0
        %1971 = vmatpush1.bf16.msra.mxu0 0
        %1972 = vmatprep.mubr.bf16.mxu0 0
        %1973 = vmatmul.mubr.bf16.gmra.mrb[0].mxu0 %v1935
        %v1974 = vpop.f32.mrb[0].mxu0
        %v1975 = vadd.f32 0.0, %v1974
        %v1976 = vpop.f32.mrb[0].mxu0
        %v1977 = vpop.f32.mrb[0].mxu0
        %v1978 = vadd.f32 0.0, %v1977
        %v1979 = vpop.f32.mrb[0].mxu0
        %1980 = vmatprep.mubr.bf16.mxu0 0
        %1981 = vmatmul.mubr.bf16.gmra.mrb[0].mxu0 %v1937
        %v1982 = vpop.f32.mrb[0].mxu0
        %v1983 = vadd.f32 0.0, %v1982
        %v1984 = vpop.f32.mrb[0].mxu0
        %v1985 = vpop.f32.mrb[0].mxu0
        %v1986 = vadd.f32 0.0, %v1985
        %v1987 = vpop.f32.mrb[0].mxu0
        %1988 = vdwg.mxu0
        %v1989 = vmul.f32 %v1916, %v1916
        %v1990 = vmul.f32 %v1919, %v1919
        %v1991 = vmul.f32 %v1924, %v1924
        %v1992 = vmul.f32 %v1927, %v1927
        %v1993 = vsub.f32 %v1975, %v1989
        %v1994 = vsub.f32 %v1978, %v1990
        %v1995 = vsub.f32 %v1983, %v1991
        %v1996 = vsub.f32 %v1986, %v1992
        %v1997 = vmax.f32 %v1993, 0.0
        %v1998 = vmax.f32 %v1994, 0.0
        %v1999 = vmax.f32 %v1995, 0.0
        %v2000 = vmax.f32 %v1996, 0.0
        %v2005 = vrot.slane %v1916, 4
        %v2006 = vrot.slane %v1919, 4
        %v2007 = vsel %vm1547, %v2005, %v2006
        %v2008 = vrot.slane %v1924, 4
        %v2009 = vsel %vm1547, %v2006, %v2008
        %v2010 = vrot.slane %v1927, 4
        %v2011 = vsel %vm1547, %v2008, %v2010
        %v2017 = vsub.f32 %v1804, %v2005
        %v2018 = vsub.f32 %v1805, %v2007
        %v2019 = vsub.f32 %v1806, %v2009
        %v2020 = vsub.f32 %v1807, %v2011
        %v2021 = vsub.f32 %v1808, %v2010
        %v2022 = vadd.f32 %v1997, 1e-05
        %v2023 = vadd.f32 %v1998, 1e-05
        %v2024 = vadd.f32 %v1999, 1e-05
        %v2025 = vadd.f32 %v2000, 1e-05
        %v2026 = vrsqrt.pop %v2022
        %v2027 = vrsqrt.pop %v2023
        %v2028 = vrsqrt.pop %v2024
        %v2029 = vrsqrt.pop %v2025
        %v2034 = vrot.slane %v2026, 4
        %v2035 = vrot.slane %v2027, 4
        %v2036 = vsel %vm1547, %v2034, %v2035
        %v2037 = vrot.slane %v2028, 4
        %v2038 = vsel %vm1547, %v2035, %v2037
        %v2039 = vrot.slane %v2029, 4
        %v2040 = vsel %vm1547, %v2037, %v2039
        %v2046 = vmul.f32 %v2017, %v2034
        %v2047 = vmul.f32 %v2018, %v2036
        %v2048 = vmul.f32 %v2019, %v2038
        %v2049 = vmul.f32 %v2020, %v2040
        %v2050 = vmul.f32 %v2021, %v2039
        %v2051 = vpack.c.bf16 %v2047, %v2046
        %v2052 = vpack.c.bf16 %v2049, %v2048
        %v2053 = vpack.c.bf16 %v2050, %v2050
        %v2055 = vlaneseq
        %v2056 = vshrl.u32 %v2055, 7
        %v2057 = vsub.s32 0, %v2056
        %v2058 = vrot.slane %v1825, %v2057
        %v2063 = vrot.slane %v2051, 2
        %v2064 = vrot.slane %v2052, 2
        %v2065 = vsel %vm1873, %v2063, %v2064
        %v2066 = vrot.slane %v2053, 2
        %v2067 = vsel %vm1873, %v2064, %v2066
        %v2086 = vunpack.c.l.b16 %v1809
        %v2087 = vunpack.c.l.b16 %v1810
        %v2088 = vunpack.c.l.b16 %v1811
        %v2089 = vunpack.c.l.b16 %v1812
        %v2090 = vunpack.c.l.b16 %v1813
        %v2091 = vunpack.c.l.b16 %v1814
        %v2092 = vunpack.c.l.b16 %v1815
        %v2093 = vunpack.c.l.b16 %v1816
        %v2094 = vunpack.c.l.b16 %v1817
        %v2095 = vunpack.c.l.b16 %v1818
        %v2096 = vunpack.c.l.b16 %v1819
        %v2097 = vunpack.c.l.b16 %v1820
        %v2098 = vunpack.c.l.b16 %v1821
        %v2099 = vunpack.c.l.b16 %v1822
        %v2100 = vunpack.c.l.b16 %v1823
        %v2101 = vunpack.c.l.b16 %v1824
        %v2102 = vpack.c.b16 %v2087, %v2086
        %v2103 = vpack.c.b16 %v2089, %v2088
        %v2104 = vpack.c.b16 %v2091, %v2090
        %v2105 = vpack.c.b16 %v2093, %v2092
        %v2106 = vpack.c.b16 %v2095, %v2094
        %v2107 = vpack.c.b16 %v2097, %v2096
        %v2108 = vpack.c.b16 %v2099, %v2098
        %v2109 = vpack.c.b16 %v2101, %v2100
        %2118 = vmatprep.subr.bf16.mxu0 0
        %2119 = vmatpush1.bf16.msra.mxu0 %v2102
        %2120 = vmatprep.subr.bf16.mxu0 0
        %2121 = vmatpush1.bf16.msra.mxu0 %v2103
        %2122 = vmatprep.subr.bf16.mxu0 0
        %2123 = vmatpush1.bf16.msra.mxu0 %v2104
        %2124 = vmatprep.subr.bf16.mxu0 0
        %2125 = vmatpush1.bf16.msra.mxu0 %v2105
        %2126 = vmatprep.subr.bf16.mxu0 0
        %2127 = vmatpush1.bf16.msra.mxu0 %v2106
        %2128 = vmatprep.subr.bf16.mxu0 0
        %2129 = vmatpush1.bf16.msra.mxu0 %v2107
        %2130 = vmatprep.subr.bf16.mxu0 0
        %2131 = vmatpush1.bf16.msra.mxu0 %v2108
        %2132 = vmatprep.subr.bf16.mxu0 0
        %2133 = vmatpush1.bf16.msra.mxu0 %v2109
        %2134 = vmatprep.subr.bf16.mxu0 0
        %2135 = vmatpush1.bf16.msra.mxu0 0
        %2136 = vmatprep.subr.bf16.mxu0 0
        %2137 = vmatpush1.bf16.msra.mxu0 0
        %2138 = vmatprep.subr.bf16.mxu0 0
        %2139 = vmatpush1.bf16.msra.mxu0 0
        %2140 = vmatprep.subr.bf16.mxu0 0
        %2141 = vmatpush1.bf16.msra.mxu0 0
        %2142 = vmatprep.subr.bf16.mxu0 0
        %2143 = vmatpush1.bf16.msra.mxu0 0
        %2144 = vmatprep.subr.bf16.mxu0 0
        %2145 = vmatpush1.bf16.msra.mxu0 0
        %2146 = vmatprep.subr.bf16.mxu0 0
        %2147 = vmatpush1.bf16.msra.mxu0 0
        %2148 = vmatprep.subr.bf16.mxu0 0
        %2149 = vmatpush1.bf16.msra.mxu0 0
        %2150 = vmatprep.mubr.bf16.mxu0 0
        %2151 = vmatmul.mubr.bf16.gmra.mrb[0].mxu0 %v2065
        %v2152 = vpop.f32.mrb[0].mxu0
        %v2153 = vadd.f32 %v2058, %v2152
        %v2154 = vpop.f32.mrb[0].mxu0
        %v2155 = vpop.f32.mrb[0].mxu0
        %v2156 = vadd.f32 %v2058, %v2155
        %v2157 = vpop.f32.mrb[0].mxu0
        %2158 = vmatprep.mubr.bf16.mxu0 0
        %2159 = vmatmul.mubr.bf16.gmra.mrb[0].mxu0 %v2067
        %v2160 = vpop.f32.mrb[0].mxu0
        %v2161 = vadd.f32 %v2058, %v2160
        %v2162 = vpop.f32.mrb[0].mxu0
        %v2163 = vpop.f32.mrb[0].mxu0
        %v2164 = vadd.f32 %v2058, %v2163
        %v2165 = vpop.f32.mrb[0].mxu0
        %2166 = vdwg.mxu0
        %v2167 = vxor.u32 %v2153, 2147483648
        %v2168 = vxor.u32 %v2156, 2147483648
        %v2169 = vxor.u32 %v2161, 2147483648
        %v2170 = vxor.u32 %v2164, 2147483648
        %v2171 = vmul.f32 %v2167, 1.442695
        %v2172 = vpow.pop %v2171
        %v2173 = vmul.f32 %v2168, 1.442695
        %v2174 = vpow.pop %v2173
        %v2175 = vmul.f32 %v2169, 1.442695
        %v2176 = vpow.pop %v2175
        %v2177 = vmul.f32 %v2170, 1.442695
        %v2178 = vpow.pop %v2177
        %v2179 = vadd.f32 %v2172, 1.0
        %v2180 = vadd.f32 %v2174, 1.0
        %v2181 = vadd.f32 %v2176, 1.0
        %v2182 = vadd.f32 %v2178, 1.0
        %v2183 = vrcp.pop %v2179
        %v2184 = vmul.f32 1.0, %v2183
        %v2185 = vrcp.pop %v2180
        %v2186 = vmul.f32 1.0, %v2185
        %v2187 = vrcp.pop %v2181
        %v2188 = vmul.f32 1.0, %v2187
        %v2189 = vrcp.pop %v2182
        %v2190 = vmul.f32 1.0, %v2189
        %v2191 = vmul.f32 %v2153, %v2184
        %v2192 = vmul.f32 %v2156, %v2186
        %v2193 = vmul.f32 %v2161, %v2188
        %v2194 = vmul.f32 %v2164, %v2190
        %v2195 = vpack.c.bf16 %v2192, %v2191
        %v2196 = vpack.c.bf16 %v2194, %v2193
        %vm2199 = vcmask 1041408
        %v2200 = vrot.slane %v2195, 6
        %v2201 = vrot.slane %v2196, 6
        %v2202 = vsel %vm2199, %v2200, %v2201
        %v2204 = vlaneseq
        %v2205 = vshrl.u32 %v2204, 7
        %v2206 = vsub.s32 0, %v2205
        %v2207 = vrot.slane %v1858, %v2206
        %v2209 = vrot.slane %v2200, 2
        %v2210 = vrot.slane %v2202, 2
        %v2211 = vsel %vm1873, %v2209, %v2210
        %v2212 = vrot.slane %v2201, 2
        %v2213 = vsel %vm1873, %v2210, %v2212
        %v2248 = vunpack.c.l.b16 %v1826
        %v2249 = vunpack.c.l.b16 %v1827
        %v2250 = vunpack.c.l.b16 %v1828
        %v2251 = vunpack.c.l.b16 %v1829
        %v2252 = vunpack.c.l.b16 %v1830
        %v2253 = vunpack.c.l.b16 %v1831
        %v2254 = vunpack.c.l.b16 %v1832
        %v2255 = vunpack.c.l.b16 %v1833
        %v2256 = vunpack.c.l.b16 %v1834
        %v2257 = vunpack.c.l.b16 %v1835
        %v2258 = vunpack.c.l.b16 %v1836
        %v2259 = vunpack.c.l.b16 %v1837
        %v2260 = vunpack.c.l.b16 %v1838
        %v2261 = vunpack.c.l.b16 %v1839
        %v2262 = vunpack.c.l.b16 %v1840
        %v2263 = vunpack.c.l.b16 %v1841
        %v2264 = vunpack.c.l.b16 %v1842
        %v2265 = vunpack.c.l.b16 %v1843
        %v2266 = vunpack.c.l.b16 %v1844
        %v2267 = vunpack.c.l.b16 %v1845
        %v2268 = vunpack.c.l.b16 %v1846
        %v2269 = vunpack.c.l.b16 %v1847
        %v2270 = vunpack.c.l.b16 %v1848
        %v2271 = vunpack.c.l.b16 %v1849
        %v2272 = vunpack.c.l.b16 %v1850
        %v2273 = vunpack.c.l.b16 %v1851
        %v2274 = vunpack.c.l.b16 %v1852
        %v2275 = vunpack.c.l.b16 %v1853
        %v2276 = vunpack.c.l.b16 %v1854
        %v2277 = vunpack.c.l.b16 %v1855
        %v2278 = vunpack.c.l.b16 %v1856
        %v2279 = vunpack.c.l.b16 %v1857
        %v2280 = vpack.c.b16 %v2249, %v2248
        %v2281 = vpack.c.b16 %v2251, %v2250
        %v2282 = vpack.c.b16 %v2253, %v2252
        %v2283 = vpack.c.b16 %v2255, %v2254
        %v2284 = vpack.c.b16 %v2257, %v2256
        %v2285 = vpack.c.b16 %v2259, %v2258
        %v2286 = vpack.c.b16 %v2261, %v2260
        %v2287 = vpack.c.b16 %v2263, %v2262
        %v2288 = vpack.c.b16 %v2265, %v2264
        %v2289 = vpack.c.b16 %v2267, %v2266
        %v2290 = vpack.c.b16 %v2269, %v2268
        %v2291 = vpack.c.b16 %v2271, %v2270
        %v2292 = vpack.c.b16 %v2273, %v2272
        %v2293 = vpack.c.b16 %v2275, %v2274
        %v2294 = vpack.c.b16 %v2277, %v2276
        %v2295 = vpack.c.b16 %v2279, %v2278
        %2312 = vmatprep.subr.bf16.mxu0 0
        %2313 = vmatpush1.bf16.msra.mxu0 %v2280
        %2314 = vmatprep.subr.bf16.mxu0 0
        %2315 = vmatpush1.bf16.msra.mxu0 %v2281
        %2316 = vmatprep.subr.bf16.mxu0 0
        %2317 = vmatpush1.bf16.msra.mxu0 %v2282
        %2318 = vmatprep.subr.bf16.mxu0 0
        %2319 = vmatpush1.bf16.msra.mxu0 %v2283
        %2320 = vmatprep.subr.bf16.mxu0 0
        %2321 = vmatpush1.bf16.msra.mxu0 %v2284
        %2322 = vmatprep.subr.bf16.mxu0 0
        %2323 = vmatpush1.bf16.msra.mxu0 %v2285
        %2324 = vmatprep.subr.bf16.mxu0 0
        %2325 = vmatpush1.bf16.msra.mxu0 %v2286
        %2326 = vmatprep.subr.bf16.mxu0 0
        %2327 = vmatpush1.bf16.msra.mxu0 %v2287
        %2328 = vmatprep.subr.bf16.mxu0 0
        %2329 = vmatpush1.bf16.msra.mxu0 %v2288
        %2330 = vmatprep.subr.bf16.mxu0 0
        %2331 = vmatpush1.bf16.msra.mxu0 %v2289
        %2332 = vmatprep.subr.bf16.mxu0 0
        %2333 = vmatpush1.bf16.msra.mxu0 %v2290
        %2334 = vmatprep.subr.bf16.mxu0 0
        %2335 = vmatpush1.bf16.msra.mxu0 %v2291
        %2336 = vmatprep.subr.bf16.mxu0 0
        %2337 = vmatpush1.bf16.msra.mxu0 %v2292
        %2338 = vmatprep.subr.bf16.mxu0 0
        %2339 = vmatpush1.bf16.msra.mxu0 %v2293
        %2340 = vmatprep.subr.bf16.mxu0 0
        %2341 = vmatpush1.bf16.msra.mxu0 %v2294
        %2342 = vmatprep.subr.bf16.mxu0 0
        %2343 = vmatpush1.bf16.msra.mxu0 %v2295
        %2344 = vmatprep.mubr.bf16.mxu0 %v2211
        %2345 = vmatmul.mubr.bf16.gmra.mrb[0].mxu0 %v2065
        %v2346 = vpop.f32.mrb[0].mxu0
        %v2347 = vadd.f32 %v2207, %v2346
        %v2348 = vpop.f32.mrb[0].mxu0
        %v2349 = vpop.f32.mrb[0].mxu0
        %v2350 = vadd.f32 %v2207, %v2349
        %v2351 = vpop.f32.mrb[0].mxu0
        %2352 = vmatprep.mubr.bf16.mxu0 %v2213
        %2353 = vmatmul.mubr.bf16.gmra.mrb[0].mxu0 %v2067
        %v2354 = vpop.f32.mrb[0].mxu0
        %v2355 = vadd.f32 %v2207, %v2354
        %v2356 = vpop.f32.mrb[0].mxu0
        %v2357 = vpop.f32.mrb[0].mxu0
        %v2358 = vadd.f32 %v2207, %v2357
        %v2359 = vpop.f32.mrb[0].mxu0
        %2360 = vdwg.mxu0
        %v2366 = vrot.slane %v1804, 4
        %v2367 = vrot.slane %v1805, 4
        %v2368 = vsel %vm1547, %v2366, %v2367
        %v2369 = vrot.slane %v1806, 4
        %v2370 = vsel %vm1547, %v2367, %v2369
        %v2371 = vrot.slane %v1807, 4
        %v2372 = vsel %vm1547, %v2369, %v2371
        %v2373 = vrot.slane %v1808, 4
        %v2374 = vsel %vm1547, %v2371, %v2373
        %v2379 = vadd.f32 %v2347, %v2368
        %v2380 = vadd.f32 %v2350, %v2370
        %v2381 = vadd.f32 %v2355, %v2372
        %v2382 = vadd.f32 %v2358, %v2374
        %2383 = vst [vmem:[%s745] sm:$0xff] %v2379
        %2384 = vst [vmem:[%s745 + $0x8] sm:$0xff] %v2380
        %2385 = vst [vmem:[%s745 + $0x10] sm:$0xff] %v2381
        %2386 = vst [vmem:[%s745 + $0x18] sm:$0xff] %v2382
        %s2387 = sand.u32 %s434, 1
        %s2388 = scalar_lea.sflag [#allocation4], %s2387
        %s2389 = sand.u32 %s434, 1
        %s2390 = smul.addr %s2389, 32
        %s2391 = scalar_lea.vmem [#allocation17], %s2390
        // Predicated region
        $region121: #{tpu_custom_call.1} parent=83 // pred_check
          %p2392 = pneg %p444
        $region122: #{tpu_custom_call.1} parent=83 // pred_check_branch
          %2394 = sbr.rel (%p2392) target = $region124
        $region123: #{tpu_custom_call.1} parent=83 // pred_region
          %s2395 = smul.u32 4, %s44
          %s2397 = ssub.s32 512, 512
          %2398 = vsyncadd %s2388, %s2397
          %s2399 = smul.addr %s43, 8
          %s2400 = sadd.s32 %s2395, %s2399
          %s2401 = smul.addr %s2400, 128
          %s2402 = scalar_lea.hbm %s16, %s2401
          %s2403 = sshll.u32 %s2391, 4
          %s2404 = int_to_ptr.vmem [resolvable:$true] %s2403
          %2409 = dma.vmem_to_hbm [thread:$0]  %s2404, 512, %s2402, %s2388, 128, 128, 8
        $region124: #{tpu_custom_call.1} parent=83 // pred_fallthru
          _
      $region84: #{tpu_custom_call.1} parent=5 // pred_fallthru
        _
      %p2410 = scmp.le.s32.totalorder 2, %s34
      // Predicated region
      $region125: #{tpu_custom_call.1} parent=5 // pred_check
        %p2411 = pneg %p2410
      $region126: #{tpu_custom_call.1} parent=5 // pred_check_branch
        %2413 = sbr.rel (%p2411) target = $region128
      $region127: #{tpu_custom_call.1} parent=5 // pred_region
        %s2414 = ssub.s32 %s34, 2
        // Predicated region
        $region129: #{tpu_custom_call.1} parent=127 // pred_check
          %p2415 = pneg %p450
        $region130: #{tpu_custom_call.1} parent=127 // pred_check_branch
          %2417 = sbr.rel (%p2415) target = $region132
        $region131: #{tpu_custom_call.1} parent=127 // pred_region
          %s2418 = sand.u32 %s435, 1
          %s2419 = scalar_lea.sflag [#allocation4], %s2418
          %s2420 = sand.u32 %s435, 1
          %s2421 = smul.addr %s2420, 32
          %s2422 = scalar_lea.vmem [#allocation17], %s2421
          %2423 = dma.done %s2419, 512
        $region132: #{tpu_custom_call.1} parent=127 // pred_fallthru
          _
      $region128: #{tpu_custom_call.1} parent=5 // pred_fallthru
        _
    $region6: #{tpu_custom_call.1} parent=1 // loop_footer
      %s38 = sadd.s32 1, %s34
    $region7: #{tpu_custom_call.1} parent=1 // loop_footer_branch
      %33 = sbr.rel target = $region3
    $region8: #{tpu_custom_call.1} parent=1 // loop_exit
      _
    %2424 = vsyncpa [#allocation3], 1
    %s2425 = scalar_lea.sflag [#allocation3], 1
    %2426 = vsyncpa %s2425, 1
    %2427 = vsyncpa [#allocation6], 1
    %s2428 = scalar_lea.sflag [#allocation6], 1
    %2429 = vsyncpa %s2428, 1
    %2430 = vsyncpa [#allocation9], 1
    %2431 = vsyncpa [#allocation12], 1
    %2432 = vsyncpa [#allocation15], 1
    %2433 = vsyncpa [#allocation4], 1
    %s2434 = scalar_lea.sflag [#allocation4], 1
    %2435 = vsyncpa %s2434, 1

</llo_original>
